<compile_context>
chip_gen: v7x
topology: tpu7x:2x2x1
jax: 0.10.0
libtpu: 0.0.40
codegen_flags: <defaults>
</compile_context>

<pallas_src>
import functools

import jax
import jax.numpy as jnp
import numpy as np
from jax.experimental import pallas as pl
from jax.experimental.pallas import tpu as pltpu

COEFF = 3.0
N_POWER_ITERATIONS = 1
BN_EPS = 1e-5
VMEM_LIMIT = 32 * 1024 * 1024

_TAPS = tuple((di, dj) for di in range(3) for dj in range(3))


# ------------------------- Pallas kernels -------------------------

def _gemm_bn_kernel(p_ref, w_ref, s_ref, b_ref, o_ref, *, relu):
    # bf16 GEMM on the MXU, f32 accumulate, f32 BN/ReLU epilogue.
    acc = jnp.dot(p_ref[...], w_ref[...], preferred_element_type=jnp.float32)
    out = acc * s_ref[...] + b_ref[...]
    if relu:
        out = jnp.maximum(out, 0.0)
    o_ref[...] = out.astype(o_ref.dtype)


def _block_s1_kernel(xp_ref, w1_ref, s1_ref, b1_ref, w2_ref, s2_ref, b2_ref,
                     o_ref, hpad_ref):
    """Fused BasicBlock, stride=1, identity shortcut (one image per grid step).

    xp_ref: (Hp, Wp, C) spatially pre-padded bf16 input (Hp=H+2, Wp=W+2)
    w1/w2_ref: (9, C, C) bf16 taps; s*/b*: (1, C) f32 folded BN.
    """
    hp, wp, c = xp_ref.shape
    h, w = hp - 2, wp - 2
    m = h * w

    # conv1 (3x3, stride 1) as 9 shifted tap GEMMs -- implicit im2col in VMEM.
    acc1 = jnp.zeros((m, c), jnp.float32)
    for t, (di, dj) in enumerate(_TAPS):
        xt = xp_ref[di:di + h, dj:dj + w, :].reshape(m, c)
        acc1 += jnp.dot(xt, w1_ref[t], preferred_element_type=jnp.float32)
    h1 = jnp.maximum(acc1 * s1_ref[...] + b1_ref[...], 0.0).astype(jnp.bfloat16)

    # conv1 output -> zero-padded VMEM scratch so conv2 taps can read a halo.
    hpad_ref[...] = jnp.zeros_like(hpad_ref)
    hpad_ref[1:h + 1, 1:w + 1, :] = h1.reshape(h, w, c)

    # conv2 (3x3, stride 1) via the same implicit-im2col taps.
    acc2 = jnp.zeros((m, c), jnp.float32)
    for t, (di, dj) in enumerate(_TAPS):
        ht = hpad_ref[di:di + h, dj:dj + w, :].reshape(m, c)
        acc2 += jnp.dot(ht, w2_ref[t], preferred_element_type=jnp.float32)
    out = acc2 * s2_ref[...] + b2_ref[...]

    # Fused identity-shortcut residual add + ReLU epilogue.
    sc = xp_ref[1:h + 1, 1:w + 1, :].reshape(m, c).astype(jnp.float32)
    o_ref[...] = jnp.maximum(out + sc, 0.0).astype(o_ref.dtype)


def _block_s2_kernel(p1_ref, w1_ref, s1_ref, b1_ref,
                     w2_ref, s2_ref, b2_ref,
                     scp_ref, scw_ref, scs_ref, scb_ref,
                     o_ref, hpad_ref):
    """Fused BasicBlock with strided conv1 + 1x1 projection shortcut
    (one image per grid step).

    p1_ref : (Ho*Wo, 9*Cin) pre-built conv1 patches (stride handled in glue)
    scp_ref: (Ho*Wo, Cin)   strided-sampled shortcut input
    """
    hp, wp, c = hpad_ref.shape
    h, w = hp - 2, wp - 2
    m = h * w

    # conv1 GEMM + BN + ReLU (single large-K GEMM, better MXU cadence).
    acc1 = jnp.dot(p1_ref[...], w1_ref[...], preferred_element_type=jnp.float32)
    h1 = jnp.maximum(acc1 * s1_ref[...] + b1_ref[...], 0.0).astype(jnp.bfloat16)

    hpad_ref[...] = jnp.zeros_like(hpad_ref)
    hpad_ref[1:h + 1, 1:w + 1, :] = h1.reshape(h, w, c)

    # conv2 (3x3, stride 1) via implicit-im2col taps on the VMEM-resident h1.
    acc2 = jnp.zeros((m, c), jnp.float32)
    for t, (di, dj) in enumerate(_TAPS):
        ht = hpad_ref[di:di + h, dj:dj + w, :].reshape(m, c)
        acc2 += jnp.dot(ht, w2_ref[t], preferred_element_type=jnp.float32)
    out = acc2 * s2_ref[...] + b2_ref[...]

    # Fused 1x1 projection shortcut + BN + add + ReLU.
    sc = jnp.dot(scp_ref[...], scw_ref[...], preferred_element_type=jnp.float32)
    sc = sc * scs_ref[...] + scb_ref[...]
    o_ref[...] = jnp.maximum(out + sc, 0.0).astype(o_ref.dtype)


def _conv_proj_add_kernel(p2_ref, w2_ref, s2_ref, b2_ref,
                          scp_ref, scw_ref, scs_ref, scb_ref, o_ref):
    """conv2 GEMM + BN + (1x1 shortcut GEMM + BN) + add + ReLU (fallback path)."""
    out = jnp.dot(p2_ref[...], w2_ref[...], preferred_element_type=jnp.float32)
    out = out * s2_ref[...] + b2_ref[...]
    sc = jnp.dot(scp_ref[...], scw_ref[...], preferred_element_type=jnp.float32)
    sc = sc * scs_ref[...] + scb_ref[...]
    o_ref[...] = jnp.maximum(out + sc, 0.0).astype(o_ref.dtype)


def _add_relu_kernel(a_ref, b_ref, o_ref):
    # f32 VPU math (v5e has no bf16 VPU), bf16 store.
    o_ref[...] = jnp.maximum(
        a_ref[...].astype(jnp.float32) + b_ref[...].astype(jnp.float32), 0.0
    ).astype(o_ref.dtype)


def _pool_linear_kernel(x_ref, w_ref, b_ref, o_ref):
    # x_ref: (N, H*W, C) -- spatial is exactly the 4x4 pooling window.
    pooled = jnp.mean(x_ref[...].astype(jnp.float32), axis=1)      # (N, C)
    o_ref[...] = (
        jnp.dot(pooled, w_ref[...], preferred_element_type=jnp.float32)
        + b_ref[...]
    ).astype(o_ref.dtype)


# ------------------------- Pallas wrappers -------------------------

def _pick_tm(m):
    for t in (512, 256, 128, 64, 32, 16, 8):
        if m % t == 0:
            return t
    return m


def _pick_tn(cout):
    # Match the 256-wide MXU on v6e/v7x when Cout is large.
    return 256 if (cout > 256 and cout % 256 == 0) else cout


def gemm_bn(patches, w2, scale, bias, relu):
    m, k = patches.shape
    cout = w2.shape[1]
    tm, tn = _pick_tm(m), _pick_tn(cout)
    kernel = functools.partial(_gemm_bn_kernel, relu=relu)
    return pl.pallas_call(
        kernel,
        out_shape=jax.ShapeDtypeStruct((m, cout), jnp.bfloat16),
        grid=(m // tm, cout // tn),
        in_specs=[
            pl.BlockSpec((tm, k), lambda i, j: (i, 0)),
            pl.BlockSpec((k, tn), lambda i, j: (0, j)),
            pl.BlockSpec((1, tn), lambda i, j: (0, j)),
            pl.BlockSpec((1, tn), lambda i, j: (0, j)),
        ],
        out_specs=pl.BlockSpec((tm, tn), lambda i, j: (i, j)),
        compiler_params=pltpu.CompilerParams(
            dimension_semantics=("parallel", "parallel"),
            vmem_limit_bytes=VMEM_LIMIT),
    )(patches, w2, scale, bias)


def block_s1_call(xp, w1t, s1, b1, w2t, s2, b2):
    n, hp, wp, c = xp.shape
    h, w = hp - 2, wp - 2
    m = h * w
    return pl.pallas_call(
        _block_s1_kernel,
        out_shape=jax.ShapeDtypeStruct((n * m, c), jnp.bfloat16),
        grid=(n,),
        in_specs=[
            pl.BlockSpec((None, hp, wp, c), lambda i: (i, 0, 0, 0)),
            pl.BlockSpec((9, c, c), lambda i: (0, 0, 0)),
            pl.BlockSpec((1, c), lambda i: (0, 0)),
            pl.BlockSpec((1, c), lambda i: (0, 0)),
            pl.BlockSpec((9, c, c), lambda i: (0, 0, 0)),
            pl.BlockSpec((1, c), lambda i: (0, 0)),
            pl.BlockSpec((1, c), lambda i: (0, 0)),
        ],
        out_specs=pl.BlockSpec((m, c), lambda i: (i, 0)),
        scratch_shapes=[pltpu.VMEM((hp, wp, c), jnp.bfloat16)],
        compiler_params=pltpu.CompilerParams(
            dimension_semantics=("parallel",), vmem_limit_bytes=VMEM_LIMIT),
    )(xp, w1t, s1, b1, w2t, s2, b2)


def block_s2_call(p1, w1g, s1, b1, w2t, s2, b2, scp, scw, scs, scb,
                  n, ho, wo, planes):
    m = ho * wo
    k1 = p1.shape[1]
    cin = scp.shape[1]
    return pl.pallas_call(
        _block_s2_kernel,
        out_shape=jax.ShapeDtypeStruct((n * m, planes), jnp.bfloat16),
        grid=(n,),
        in_specs=[
            pl.BlockSpec((m, k1), lambda i: (i, 0)),
            pl.BlockSpec((k1, planes), lambda i: (0, 0)),
            pl.BlockSpec((1, planes), lambda i: (0, 0)),
            pl.BlockSpec((1, planes), lambda i: (0, 0)),
            pl.BlockSpec((9, planes, planes), lambda i: (0, 0, 0)),
            pl.BlockSpec((1, planes), lambda i: (0, 0)),
            pl.BlockSpec((1, planes), lambda i: (0, 0)),
            pl.BlockSpec((m, cin), lambda i: (i, 0)),
            pl.BlockSpec((cin, planes), lambda i: (0, 0)),
            pl.BlockSpec((1, planes), lambda i: (0, 0)),
            pl.BlockSpec((1, planes), lambda i: (0, 0)),
        ],
        out_specs=pl.BlockSpec((m, planes), lambda i: (i, 0)),
        scratch_shapes=[pltpu.VMEM((ho + 2, wo + 2, planes), jnp.bfloat16)],
        compiler_params=pltpu.CompilerParams(
            dimension_semantics=("parallel",), vmem_limit_bytes=VMEM_LIMIT),
    )(p1, w1g, s1, b1, w2t, s2, b2, scp, scw, scs, scb)


def conv_proj_add(p2, w2g, s2, b2, scp, scw, scs, scb):
    m, k2 = p2.shape
    cout = w2g.shape[1]
    cin = scp.shape[1]
    tm, tn = _pick_tm(m), _pick_tn(cout)
    return pl.pallas_call(
        _conv_proj_add_kernel,
        out_shape=jax.ShapeDtypeStruct((m, cout), jnp.bfloat16),
        grid=(m // tm, cout // tn),
        in_specs=[
            pl.BlockSpec((tm, k2), lambda i, j: (i, 0)),
            pl.BlockSpec((k2, tn), lambda i, j: (0, j)),
            pl.BlockSpec((1, tn), lambda i, j: (0, j)),
            pl.BlockSpec((1, tn), lambda i, j: (0, j)),
            pl.BlockSpec((tm, cin), lambda i, j: (i, 0)),
            pl.BlockSpec((cin, tn), lambda i, j: (0, j)),
            pl.BlockSpec((1, tn), lambda i, j: (0, j)),
            pl.BlockSpec((1, tn), lambda i, j: (0, j)),
        ],
        out_specs=pl.BlockSpec((tm, tn), lambda i, j: (i, j)),
        compiler_params=pltpu.CompilerParams(
            dimension_semantics=("parallel", "parallel"),
            vmem_limit_bytes=VMEM_LIMIT),
    )(p2, w2g, s2, b2, scp, scw, scs, scb)


def add_relu(a, b):
    m, c = a.shape
    tm = _pick_tm(m)
    return pl.pallas_call(
        _add_relu_kernel,
        out_shape=jax.ShapeDtypeStruct((m, c), jnp.bfloat16),
        grid=(m // tm,),
        in_specs=[pl.BlockSpec((tm, c), lambda i: (i, 0)),
                  pl.BlockSpec((tm, c), lambda i: (i, 0))],
        out_specs=pl.BlockSpec((tm, c), lambda i: (i, 0)),
        compiler_params=pltpu.CompilerParams(
            dimension_semantics=("parallel",), vmem_limit_bytes=VMEM_LIMIT),
    )(a, b)


def pool_linear(x3, w_t, b):
    n, hw, c = x3.shape
    nc = w_t.shape[1]
    return pl.pallas_call(
        _pool_linear_kernel,
        out_shape=jax.ShapeDtypeStruct((n, nc), jnp.float32),
        grid=(1,),
        in_specs=[pl.BlockSpec((n, hw, c), lambda i: (0, 0, 0)),
                  pl.BlockSpec((c, nc), lambda i: (0, 0)),
                  pl.BlockSpec((1, nc), lambda i: (0, 0))],
        out_specs=pl.BlockSpec((n, nc), lambda i: (0, 0)),
        compiler_params=pltpu.CompilerParams(
            dimension_semantics=("arbitrary",), vmem_limit_bytes=VMEM_LIMIT),
    )(x3, w_t, b)


# ------------------------- JAX glue (layout only) -------------------------

def _im2col(x, k, stride, pad):
    n, h, w, c = x.shape
    if pad > 0:
        x = jnp.pad(x, ((0, 0), (pad, pad), (pad, pad), (0, 0)))
    ho = (h + 2 * pad - k) // stride + 1
    wo = (w + 2 * pad - k) // stride + 1
    cols = [x[:, di:di + ho * stride:stride, dj:dj + wo * stride:stride, :]
            for di in range(k) for dj in range(k)]
    patches = cols[0] if len(cols) == 1 else jnp.concatenate(cols, axis=-1)
    return patches.reshape(n * ho * wo, k * k * c), (n, ho, wo)


def _w_gemm_from_conv(w):
    """PyTorch (O, I, kh, kw) -> (kh*kw*I, O) bf16, matching im2col column order."""
    o, i, kh, kw = w.shape
    return jnp.transpose(w, (2, 3, 1, 0)).reshape(kh * kw * i, o).astype(jnp.bfloat16)


def _w_taps_from_conv(w):
    """PyTorch (O, I, 3, 3) -> (9, I, O) bf16 taps (di-major, dj-minor)."""
    o, i, kh, kw = w.shape
    return jnp.transpose(w, (2, 3, 1, 0)).reshape(kh * kw, i, o).astype(jnp.bfloat16)


# ------------------------- spectral norm / BN preprocessing -------------------------

def _power_iteration_sigma(w_mat, key, n_iter):
    u = jax.random.normal(key, (w_mat.shape[0],), jnp.float32)
    u = u / (jnp.linalg.norm(u) + 1e-12)
    v = None
    for _ in range(n_iter):
        v = w_mat.T @ u
        v = v / (jnp.linalg.norm(v) + 1e-12)
        u = w_mat @ v
        u = u / (jnp.linalg.norm(u) + 1e-12)
    return u @ (w_mat @ v)


def spectral_norm_conv(w, key):
    """nn.utils.spectral_norm (3x3 convs): W / sigma."""
    sigma = _power_iteration_sigma(w.reshape(w.shape[0], -1), key, N_POWER_ITERATIONS)
    return w / sigma


def spectral_norm_fc_conv(w, key):
    """spectral_norm_fc (1x1 convs): W / max(1, sigma / coeff)."""
    sigma = _power_iteration_sigma(w.reshape(w.shape[0], -1), key, N_POWER_ITERATIONS)
    factor = jnp.maximum(jnp.array(1.0, jnp.float32), sigma / COEFF)
    return w / factor


def spectral_bn_scale_bias(gamma, beta, mean, var):
    """SpectralBatchNorm2d (eval mode) folded into per-channel scale/bias."""
    inv_std = 1.0 / jnp.sqrt(var + BN_EPS)
    lipschitz = jnp.max(jnp.abs(gamma) * inv_std)
    factor = jnp.maximum(lipschitz / COEFF, 1.0)
    gamma_eff = gamma / factor
    scale = gamma_eff * inv_std
    bias = beta - mean * scale
    return scale, bias


# ------------------------- parameters -------------------------

def build_params(key, num_blocks=(1, 1, 1, 1), num_classes=10):
    key_iter = iter(jax.random.split(key, 512))
    nk = lambda: next(key_iter)

    def conv_w(out_c, in_c, k):
        fan_in = in_c * k * k
        std = float(np.sqrt(2.0 / fan_in))
        return jax.random.normal(nk(), (out_c, in_c, k, k), jnp.float32) * std

    def bn(c):
        gamma = jax.random.uniform(nk(), (c,), jnp.float32, 0.5, 1.5)
        beta = jax.random.normal(nk(), (c,), jnp.float32) * 0.1
        mean = jax.random.normal(nk(), (c,), jnp.float32) * 0.1
        var = jax.random.uniform(nk(), (c,), jnp.float32, 0.5, 1.5)
        s, b = spectral_bn_scale_bias(gamma, beta, mean, var)
        return s.reshape(1, c), b.reshape(1, c)

    params = {}
    # stem: conv3x3(3, 64) + SpectralBatchNorm2d(64); K=27 zero-padded to 32.
    w = spectral_norm_conv(conv_w(64, 3, 3), nk())
    wg = _w_gemm_from_conv(w)
    kp = ((wg.shape[0] + 31) // 32) * 32
    wg = jnp.pad(wg, ((0, kp - wg.shape[0]), (0, 0)))
    s, b = bn(64)
    params["stem"] = {"w_gemm": wg, "s": s, "b": b}

    in_planes = 64
    layer_cfgs = [(64, num_blocks[0], 1), (128, num_blocks[1], 2),
                  (256, num_blocks[2], 2), (512, num_blocks[3], 2)]
    layers = []
    for planes, nb, stride in layer_cfgs:
        strides = [stride] + [1] * (nb - 1)
        blocks = []
        for s_ in strides:
            w1 = spectral_norm_conv(conv_w(planes, in_planes, 3), nk())
            w2 = spectral_norm_conv(conv_w(planes, planes, 3), nk())
            s1, b1 = bn(planes)
            s2, b2 = bn(planes)
            blk = {"stride": s_, "in_planes": in_planes, "planes": planes,
                   "w1_gemm": _w_gemm_from_conv(w1), "w1_taps": _w_taps_from_conv(w1),
                   "s1": s1, "b1": b1,
                   "w2_gemm": _w_gemm_from_conv(w2), "w2_taps": _w_taps_from_conv(w2),
                   "s2": s2, "b2": b2}
            if s_ != 1 or in_planes != planes:
                wsc = spectral_norm_fc_conv(conv_w(planes, in_planes, 1), nk())
                blk["sc_w"] = jnp.transpose(wsc[:, :, 0, 0], (1, 0)).astype(jnp.bfloat16)
                blk["sc_s"], blk["sc_b"] = bn(planes)
            else:
                blk["sc_w"] = None
            blocks.append(blk)
            in_planes = planes  # BasicBlock expansion == 1
        layers.append(blocks)
    params["layers"] = layers

    bound = float(1.0 / np.sqrt(512))
    lw = jax.random.uniform(nk(), (num_classes, 512), jnp.float32, -bound, bound)
    lb = jax.random.uniform(nk(), (num_classes,), jnp.float32, -bound, bound)
    params["linear_w_t"] = lw.T
    params["linear_b"] = lb.reshape(1, num_classes)
    return params


# ------------------------- forward -------------------------

def stem_forward(x, stem):
    patches, (n, ho, wo) = _im2col(x, 3, 1, 1)
    kp = stem["w_gemm"].shape[0]
    if kp > patches.shape[1]:
        patches = jnp.pad(patches, ((0, 0), (0, kp - patches.shape[1])))
    out = gemm_bn(patches, stem["w_gemm"], stem["s"], stem["b"], relu=True)
    return out.reshape(n, ho, wo, stem["w_gemm"].shape[1])


def basic_block(x, blk):
    n, h, w, cin = x.shape
    stride, planes = blk["stride"], blk["planes"]
    ho, wo = h // stride, w // stride
    m = n * ho * wo
    identity = blk["sc_w"] is None

    if identity and stride == 1 and (w % 8 == 0):
        # Fully fused block, both convs via implicit in-kernel im2col.
        xp = jnp.pad(x, ((0, 0), (1, 1), (1, 1), (0, 0)))
        out = block_s1_call(xp, blk["w1_taps"], blk["s1"], blk["b1"],
                            blk["w2_taps"], blk["s2"], blk["b2"])
    elif (not identity) and (wo % 8 == 0):
        # Fused block: conv1 patches built in glue (stride), conv2 in-kernel.
        p1, _ = _im2col(x, 3, stride, 1)
        scp = x[:, ::stride, ::stride, :].reshape(m, cin)
        out = block_s2_call(p1, blk["w1_gemm"], blk["s1"], blk["b1"],
                            blk["w2_taps"], blk["s2"], blk["b2"],
                            scp, blk["sc_w"], blk["sc_s"], blk["sc_b"],
                            n, ho, wo, planes)
    else:
        # Fallback (tiny, sublane-unaligned spatial sizes, e.g. 4x4): GEMMs on
        # XLA-built patches; conv2 + shortcut + add + ReLU still one fused kernel.
        p1, _ = _im2col(x, 3, stride, 1)
        h1 = gemm_bn(p1, blk["w1_gemm"], blk["s1"], blk["b1"], relu=True)
        p2, _ = _im2col(h1.reshape(n, ho, wo, planes), 3, 1, 1)
        if identity:
            h2 = gemm_bn(p2, blk["w2_gemm"], blk["s2"], blk["b2"], relu=False)
            out = add_relu(h2, x.reshape(m, planes))
        else:
            scp = x[:, ::stride, ::stride, :].reshape(m, cin)
            out = conv_proj_add(p2, blk["w2_gemm"], blk["s2"], blk["b2"],
                                scp, blk["sc_w"], blk["sc_s"], blk["sc_b"])
    return out.reshape(n, ho, wo, planes)


def spectral_resnet_forward(x_nchw, params):
    # PyTorch NCHW input -> NHWC bf16 for all internal compute.
    x = jnp.transpose(x_nchw, (0, 2, 3, 1)).astype(jnp.bfloat16)
    x = stem_forward(x, params["stem"])                 # relu(bn1(conv1(x)))
    for blocks in params["layers"]:
        for blk in blocks:
            x = basic_block(x, blk)
    n, h, w, c = x.shape
    if (h, w) != (4, 4):
        # TODO(synk): F.avg_pool2d(out, 4) is implemented as a global 4x4 mean,
        # valid only for 32x32 inputs (final feature map exactly 4x4).
        raise NotImplementedError("head expects a 4x4 final feature map")
    return pool_linear(x.reshape(n, h * w, c),
                       params["linear_w_t"], params["linear_b"])


# ------------------------- main -------------------------

if __name__ == "__main__":
    root = jax.random.PRNGKey(0)
    pkey, xkey = jax.random.split(root)

    params = build_params(pkey, num_blocks=(1, 1, 1, 1), num_classes=10)
    # CIFAR-style input so the final avg_pool2d(4) is valid: 32 -> 32 -> 16 -> 8 -> 4.
    x = jax.random.normal(xkey, (2, 3, 32, 32), jnp.float32)

    out = spectral_resnet_forward(x, params)
    out = jax.block_until_ready(out)

    assert out.shape == (2, 10), out.shape
    assert bool(jnp.all(jnp.isfinite(out)))
    print("KERNEL_OK")
</pallas_src>

<mosaic_0001>
module attributes {stable_mosaic.version = 11 : i64} {
  func.func @_gemm_bn_kernel(%arg0: i32, %arg1: i32, %arg2: memref<512x32xbf16, #tpu.memory_space<vmem>>, %arg3: memref<32x64xbf16, #tpu.memory_space<vmem>>, %arg4: memref<1x64xf32, #tpu.memory_space<vmem>>, %arg5: memref<1x64xf32, #tpu.memory_space<vmem>>, %arg6: memref<512x64xbf16, #tpu.memory_space<vmem>>) attributes {dimension_semantics = [#tpu.dimension_semantics<parallel>, #tpu.dimension_semantics<parallel>], iteration_bounds = array<i64: 4, 1>, scalar_prefetch = 0 : i64, scratch_operands = 0 : i64, tpu.core_type = #tpu.core_type<tc>, window_params = [{transform_indices = @transform_0, window_bounds = array<i64: 512, 32>}, {transform_indices = @transform_1, window_bounds = array<i64: 32, 64>}, {transform_indices = @transform_2, window_bounds = array<i64: 1, 64>}, {transform_indices = @transform_3, window_bounds = array<i64: 1, 64>}, {transform_indices = @transform_4, window_bounds = array<i64: 512, 64>}]} {
    %c0 = arith.constant 0 : index
    %c0_0 = arith.constant 0 : index
    %0 = vector.load %arg2[%c0, %c0_0] : memref<512x32xbf16, #tpu.memory_space<vmem>>, vector<512x32xbf16>
    %c0_1 = arith.constant 0 : index
    %c0_2 = arith.constant 0 : index
    %1 = vector.load %arg3[%c0_1, %c0_2] : memref<32x64xbf16, #tpu.memory_space<vmem>>, vector<32x64xbf16>
    %cst = arith.constant dense<0.000000e+00> : vector<512x64xf32>
    %2 = tpu.matmul %0, %1, %cst {dimension_numbers = #tpu.dot_dimension_numbers<[1], [0], [0], [1], [0, 0, 1, 1], [], []>} : vector<512x32xbf16>, vector<32x64xbf16>, vector<512x64xf32> -> vector<512x64xf32>
    %c0_3 = arith.constant 0 : index
    %c0_4 = arith.constant 0 : index
    %3 = vector.load %arg4[%c0_3, %c0_4] : memref<1x64xf32, #tpu.memory_space<vmem>>, vector<1x64xf32>
    %4 = vector.broadcast %3 : vector<1x64xf32> to vector<512x64xf32>
    %5 = arith.mulf %2, %4 : vector<512x64xf32>
    %c0_5 = arith.constant 0 : index
    %c0_6 = arith.constant 0 : index
    %6 = vector.load %arg5[%c0_5, %c0_6] : memref<1x64xf32, #tpu.memory_space<vmem>>, vector<1x64xf32>
    %7 = vector.broadcast %6 : vector<1x64xf32> to vector<512x64xf32>
    %8 = arith.addf %5, %7 : vector<512x64xf32>
    %cst_7 = arith.constant 0.000000e+00 : f32
    %9 = vector.broadcast %cst_7 : f32 to vector<512x64xf32>
    %10 = arith.maximumf %8, %9 : vector<512x64xf32>
    %11 = arith.truncf %10 : vector<512x64xf32> to vector<512x64xbf16>
    %c0_8 = arith.constant 0 : index
    %c0_9 = arith.constant 0 : index
    %12 = vector.load %arg6[%c0_8, %c0_9] : memref<512x64xbf16, #tpu.memory_space<vmem>>, vector<512x64xbf16>
    tpu.vector_store %arg6[%c0_8, %c0_9], %11 {strides = array<i32>} : memref<512x64xbf16, #tpu.memory_space<vmem>>, vector<512x64xbf16>,
    return
  }
  func.func @transform_0(%arg0: i32, %arg1: i32) -> (i32, i32) {
    %c0_i32 = arith.constant 0 : i32
    %c0_i32_0 = arith.constant 0 : i32
    return %arg0, %c0_i32 : i32, i32
  }
  func.func @transform_1(%arg0: i32, %arg1: i32) -> (i32, i32) {
    %c0_i32 = arith.constant 0 : i32
    %c0_i32_0 = arith.constant 0 : i32
    return %c0_i32, %arg1 : i32, i32
  }
  func.func @transform_2(%arg0: i32, %arg1: i32) -> (i32, i32) {
    %c0_i32 = arith.constant 0 : i32
    %c0_i32_0 = arith.constant 0 : i32
    return %c0_i32, %arg1 : i32, i32
  }
  func.func @transform_3(%arg0: i32, %arg1: i32) -> (i32, i32) {
    %c0_i32 = arith.constant 0 : i32
    %c0_i32_0 = arith.constant 0 : i32
    return %c0_i32, %arg1 : i32, i32
  }
  func.func @transform_4(%arg0: i32, %arg1: i32) -> (i32, i32) {
    %c0_i32 = arith.constant 0 : i32
    return %arg0, %arg1 : i32, i32
  }
}

</mosaic_0001>

<llo_original>
// kernel: tpu_custom_call.1
$region0: #{tpu_custom_call.1}
  #allocation0 [shape = 'u32[]', space=smem, size = 0x4, offset = 0x4, fixed_abs, tag = 'smem constant byte address 0x4 - core index']
  #allocation1 [shape = 'u32[144,128]{1,0:T(1,128)}', space=vmem, size = 0x12000, scoped, tag = 'internal scratch']
  %s0 = inlined_call_operand.vmem [shape: bf16[2048,32], index: 0, kind: input, shape index: {}]
  %s1 = inlined_call_operand.vmem [shape: bf16[32,64], index: 1, kind: input, shape index: {}]
  %s2 = inlined_call_operand.vmem [shape: f32[1,64], index: 2, kind: input, shape index: {}]
  %s3 = inlined_call_operand.vmem [shape: f32[1,64], index: 3, kind: input, shape index: {}]
  %s4 = inlined_call_operand.vmem [shape: bf16[2048,64], index: 4, kind: output, shape index: {}]
  %s5 = sld [smem:[#allocation0]]
  $region49: #{tpu_custom_call.1} parent=0
    _
  %s7 = ssub.s32 1, %s5
  %s8 = scalar_select 0, %s7, %s5
  loop: start=0, step=1, limit=6
  $region2: #{tpu_custom_call.1} parent=0 // loop_pre_header
    _
  $region3: #{tpu_custom_call.1} parent=0 // loop_header
    %s10 = sphi 0, %s14
    %p11 = scmp.ge.s32.totalorder %s10, 6
    %s17 = sphi 0, %s29
    %s18 = sphi 0, %s25
    %s19 = sphi 0, %s17
    %s20 = sphi 0, %s18
    %s21 = sphi 0, %s19
    %s22 = sphi 0, %s20
    %s32 = sphi 0, %s34
    %s35 = sphi 0, %s32
    %s36 = sphi 0, %s35
    %s52 = sphi 0, %s36
    %s58 = sphi 0, %s60
    %s61 = sphi 0, %s58
    %s62 = sphi 0, %s61
    %s78 = sphi 0, %s62
    %s84 = sphi 0, %s86
    %s87 = sphi 0, %s84
    %s88 = sphi 0, %s87
    %s104 = sphi 0, %s88
    %s110 = sphi 0, %s112
    %s113 = sphi 0, %s110
    %s114 = sphi 0, %s113
    %s130 = sphi 0, %s114
    %s138 = sphi 0, %s140
    %s141 = sphi 0, %s138
    %s142 = sphi 0, %s141
    %s158 = sphi 0, %s142
  $region4: #{tpu_custom_call.1} parent=0 // loop_header_branch
    %13 = sbr.rel (%p11) target = $region8
  $region5: #{tpu_custom_call.1} parent=0 // loop_body
    %s15 = ssub.s32 %s10, 1
    %s16 = ssub.s32 %s10, 2
    %s23 = sadd.s32 1, %s18
    %p24 = scmp.ge.s32.totalorder %s23, 1
    %s25 = scalar_select %p24, 0, %s23
    %s26 = sadd.s32 1, %s17
    %s27 = scalar_select %p24, %s26, %s17
    %p28 = scmp.ge.s32.totalorder %s27, 4
    %s29 = scalar_select %p28, 0, %s27
    %s30 = ssub.s32 %s17, %s29
    %p31 = scmp.eq.s32.totalorder %s30, 0
    %s33 = sadd.s32 %s32, 1
    %s34 = scalar_select %p31, %s32, %s33
    %p37 = pneg %p31
    %p38 = scmp.eq.s32.totalorder %s10, 3
    %p39 = por %p37, %p38
    %p40 = scmp.ne.s32.totalorder %s32, %s35
    %p41 = scmp.eq.s32.totalorder %s10, 0
    %p42 = por %p40, %p41
    %p43 = scmp.ne.s32.totalorder %s32, %s35
    %p44 = scmp.eq.s32.totalorder %s15, 3
    %p45 = por %p43, %p44
    %p46 = scmp.ne.s32.totalorder %s35, %s36
    %p47 = scmp.eq.s32.totalorder %s15, 0
    %p48 = por %p46, %p47
    %p49 = scmp.ne.s32.totalorder %s35, %s36
    %p50 = scmp.eq.s32.totalorder %s16, 3
    %p51 = por %p49, %p50
    %p53 = scmp.ne.s32.totalorder %s36, %s52
    %p54 = scmp.eq.s32.totalorder %s16, 0
    %p55 = por %p53, %p54
    %s56 = ssub.s32 %s18, %s25
    %p57 = scmp.eq.s32.totalorder %s56, 0
    %s59 = sadd.s32 %s58, 1
    %s60 = scalar_select %p57, %s58, %s59
    %p63 = pneg %p57
    %p64 = scmp.eq.s32.totalorder %s10, 3
    %p65 = por %p63, %p64
    %p66 = scmp.ne.s32.totalorder %s58, %s61
    %p67 = scmp.eq.s32.totalorder %s10, 0
    %p68 = por %p66, %p67
    %p69 = scmp.ne.s32.totalorder %s58, %s61
    %p70 = scmp.eq.s32.totalorder %s15, 3
    %p71 = por %p69, %p70
    %p72 = scmp.ne.s32.totalorder %s61, %s62
    %p73 = scmp.eq.s32.totalorder %s15, 0
    %p74 = por %p72, %p73
    %p75 = scmp.ne.s32.totalorder %s61, %s62
    %p76 = scmp.eq.s32.totalorder %s16, 3
    %p77 = por %p75, %p76
    %p79 = scmp.ne.s32.totalorder %s62, %s78
    %p80 = scmp.eq.s32.totalorder %s16, 0
    %p81 = por %p79, %p80
    %s82 = ssub.s32 %s18, %s25
    %p83 = scmp.eq.s32.totalorder %s82, 0
    %s85 = sadd.s32 %s84, 1
    %s86 = scalar_select %p83, %s84, %s85
    %p89 = pneg %p83
    %p90 = scmp.eq.s32.totalorder %s10, 3
    %p91 = por %p89, %p90
    %p92 = scmp.ne.s32.totalorder %s84, %s87
    %p93 = scmp.eq.s32.totalorder %s10, 0
    %p94 = por %p92, %p93
    %p95 = scmp.ne.s32.totalorder %s84, %s87
    %p96 = scmp.eq.s32.totalorder %s15, 3
    %p97 = por %p95, %p96
    %p98 = scmp.ne.s32.totalorder %s87, %s88
    %p99 = scmp.eq.s32.totalorder %s15, 0
    %p100 = por %p98, %p99
    %p101 = scmp.ne.s32.totalorder %s87, %s88
    %p102 = scmp.eq.s32.totalorder %s16, 3
    %p103 = por %p101, %p102
    %p105 = scmp.ne.s32.totalorder %s88, %s104
    %p106 = scmp.eq.s32.totalorder %s16, 0
    %p107 = por %p105, %p106
    %s108 = ssub.s32 %s18, %s25
    %p109 = scmp.eq.s32.totalorder %s108, 0
    %s111 = sadd.s32 %s110, 1
    %s112 = scalar_select %p109, %s110, %s111
    %p115 = pneg %p109
    %p116 = scmp.eq.s32.totalorder %s10, 3
    %p117 = por %p115, %p116
    %p118 = scmp.ne.s32.totalorder %s110, %s113
    %p119 = scmp.eq.s32.totalorder %s10, 0
    %p120 = por %p118, %p119
    %p121 = scmp.ne.s32.totalorder %s110, %s113
    %p122 = scmp.eq.s32.totalorder %s15, 3
    %p123 = por %p121, %p122
    %p124 = scmp.ne.s32.totalorder %s113, %s114
    %p125 = scmp.eq.s32.totalorder %s15, 0
    %p126 = por %p124, %p125
    %p127 = scmp.ne.s32.totalorder %s113, %s114
    %p128 = scmp.eq.s32.totalorder %s16, 3
    %p129 = por %p127, %p128
    %p131 = scmp.ne.s32.totalorder %s114, %s130
    %p132 = scmp.eq.s32.totalorder %s16, 0
    %p133 = por %p131, %p132
    %s134 = ssub.s32 %s17, %s29
    %s135 = ssub.s32 %s18, %s25
    %s136 = sor.u32 %s134, %s135
    %p137 = scmp.eq.s32.totalorder %s136, 0
    %s139 = sadd.s32 %s138, 1
    %s140 = scalar_select %p137, %s138, %s139
    %p143 = pneg %p137
    %p144 = scmp.eq.s32.totalorder %s10, 3
    %p145 = por %p143, %p144
    %p146 = scmp.ne.s32.totalorder %s138, %s141
    %p147 = scmp.eq.s32.totalorder %s10, 0
    %p148 = por %p146, %p147
    %p149 = scmp.ne.s32.totalorder %s138, %s141
    %p150 = scmp.eq.s32.totalorder %s15, 3
    %p151 = por %p149, %p150
    %p152 = scmp.ne.s32.totalorder %s141, %s142
    %p153 = scmp.eq.s32.totalorder %s15, 0
    %p154 = por %p152, %p153
    %p155 = scmp.ne.s32.totalorder %s141, %s142
    %p156 = scmp.eq.s32.totalorder %s16, 3
    %p157 = por %p155, %p156
    %p159 = scmp.ne.s32.totalorder %s142, %s158
    %p160 = scmp.eq.s32.totalorder %s16, 0
    %p161 = por %p159, %p160
    %p162 = scmp.le.s32.totalorder 1, %s10
    %p163 = scmp.lt.s32.totalorder %s10, 5
    %p164 = pnand %p162, %p163
    %p165 = pneg %p164
    // Predicated region
    $region9: #{tpu_custom_call.1} parent=5 // pred_check
      _
    $region10: #{tpu_custom_call.1} parent=5 // pred_check_branch
      %167 = sbr.rel (%p164) target = $region12
    $region11: #{tpu_custom_call.1} parent=5 // pred_region
      %s168 = ssub.s32 %s10, 1
      // Predicated region
      $region13: #{tpu_custom_call.1} parent=11 // pred_check
        %p169 = pneg %p74
      $region14: #{tpu_custom_call.1} parent=11 // pred_check_branch
        %171 = sbr.rel (%p169) target = $region16
      $region15: #{tpu_custom_call.1} parent=11 // pred_region
        %p172 = scmp.lt.s32.totalorder %s20, 0
        %s173 = scalar_select %p172, %s20, 0
        %s174 = smul.addr %s173, 4
        %s175 = scalar_lea.vmem %s1, %s174
      $region16: #{tpu_custom_call.1} parent=11 // pred_fallthru
        _
      // Predicated region
      $region17: #{tpu_custom_call.1} parent=11 // pred_check
        %p176 = pneg %p100
      $region18: #{tpu_custom_call.1} parent=11 // pred_check_branch
        %178 = sbr.rel (%p176) target = $region20
      $region19: #{tpu_custom_call.1} parent=11 // pred_region
        %p179 = scmp.lt.s32.totalorder %s20, 0
        %s180 = scalar_select %p179, %s20, 0
        %s181 = scalar_lea.vmem %s2, %s180
      $region20: #{tpu_custom_call.1} parent=11 // pred_fallthru
        _
      // Predicated region
      $region21: #{tpu_custom_call.1} parent=11 // pred_check
        %p182 = pneg %p126
      $region22: #{tpu_custom_call.1} parent=11 // pred_check_branch
        %184 = sbr.rel (%p182) target = $region24
      $region23: #{tpu_custom_call.1} parent=11 // pred_region
        %p185 = scmp.lt.s32.totalorder %s20, 0
        %s186 = scalar_select %p185, %s20, 0
        %s187 = scalar_lea.vmem %s3, %s186
      $region24: #{tpu_custom_call.1} parent=11 // pred_fallthru
        _
    $region12: #{tpu_custom_call.1} parent=5 // pred_fallthru
      _
    %p188 = scmp.lt.s32.totalorder %s10, 4
    // Predicated region
    $region25: #{tpu_custom_call.1} parent=5 // pred_check
      %p189 = pneg %p188
    $region26: #{tpu_custom_call.1} parent=5 // pred_check_branch
      %191 = sbr.rel (%p189) target = $region28
    $region27: #{tpu_custom_call.1} parent=5 // pred_region
      // Predicated region
      $region29: #{tpu_custom_call.1} parent=27 // pred_check
        %p192 = pneg %p42
      $region30: #{tpu_custom_call.1} parent=27 // pred_check_branch
        %194 = sbr.rel (%p192) target = $region32
      $region31: #{tpu_custom_call.1} parent=27 // pred_region
        %s195 = smul.u32 64, %s17
        %p196 = scmp.lt.s32.totalorder %s195, 255
        %s197 = scalar_select %p196, %s195, 255
        %s198 = smul.addr %s197, 4
        %s199 = scalar_lea.vmem %s0, %s198
        %s200 = smul.u32 64, %s17
      $region32: #{tpu_custom_call.1} parent=27 // pred_fallthru
        _
    $region28: #{tpu_custom_call.1} parent=5 // pred_fallthru
      _
    %p201 = scmp.le.s32.totalorder 1, %s10
    %p202 = scmp.lt.s32.totalorder %s10, 5
    %p203 = pnand %p201, %p202
    %p204 = pneg %p203
    // Predicated region
    $region33: #{tpu_custom_call.1} parent=5 // pred_check
      _
    $region34: #{tpu_custom_call.1} parent=5 // pred_check_branch
      %206 = sbr.rel (%p203) target = $region36
    $region35: #{tpu_custom_call.1} parent=5 // pred_region
      %s207 = ssub.s32 %s10, 1
      %s208 = smul.u32 64, %s19
      %p209 = scmp.lt.s32.totalorder %s208, 255
      %s210 = scalar_select %p209, %s208, 255
      %s211 = smul.addr %s210, 4
      %s212 = scalar_lea.vmem %s0, %s211
      %p213 = pneg %p48
      %p214 = pneg %p45
      %p215 = scmp.lt.s32.totalorder %s20, 0
      %s216 = scalar_select %p215, %s20, 0
      %s217 = smul.addr %s216, 4
      %s218 = scalar_lea.vmem %s1, %s217
      %p219 = pneg %p74
      %p220 = pneg %p71
      %p221 = scmp.lt.s32.totalorder %s20, 0
      %s222 = scalar_select %p221, %s20, 0
      %s223 = scalar_lea.vmem %s2, %s222
      %p224 = pneg %p100
      %p225 = pneg %p97
      %p226 = scmp.lt.s32.totalorder %s20, 0
      %s227 = scalar_select %p226, %s20, 0
      %s228 = scalar_lea.vmem %s3, %s227
      %p229 = pneg %p126
      %p230 = pneg %p123
      %p231 = pneg %p154
      %p232 = pneg %p151
      %s233 = smul.u32 64, %s19
      %p234 = scmp.lt.s32.totalorder %s233, 255
      %s235 = scalar_select %p234, %s233, 255
      %p236 = scmp.lt.s32.totalorder %s20, 0
      %s237 = scalar_select %p236, %s20, 0
      %s238 = sadd.s32 %s237, %s235
      %s239 = smul.addr %s238, 4
      %s240 = scalar_lea.vmem %s4, %s239
      %s241 = smul.u32 64, %s19
      %p242 = scmp.lt.s32.totalorder %s241, 255
      %s243 = scalar_select %p242, %s241, 255
      %s244 = smul.addr %s243, 4
      %s245 = scalar_lea.vmem %s0, %s244
      %s246 = smul.u32 64, %s19
      %p247 = scmp.lt.s32.totalorder %s20, 0
      %s248 = scalar_select %p247, %s20, 0
      %s249 = smul.addr %s248, 4
      %s250 = scalar_lea.vmem %s1, %s249
      %p251 = scmp.lt.s32.totalorder %s20, 0
      %s252 = scalar_select %p251, %s20, 0
      %s253 = scalar_lea.vmem %s2, %s252
      %p254 = scmp.lt.s32.totalorder %s20, 0
      %s255 = scalar_select %p254, %s20, 0
      %s256 = scalar_lea.vmem %s3, %s255
      %s257 = smul.u32 64, %s19
      %p258 = scmp.lt.s32.totalorder %s257, 255
      %s259 = scalar_select %p258, %s257, 255
      %p260 = scmp.lt.s32.totalorder %s20, 0
      %s261 = scalar_select %p260, %s20, 0
      %s262 = sadd.s32 %s261, %s259
      %s263 = smul.addr %s262, 4
      %s264 = scalar_lea.vmem %s4, %s263
      %s265 = smul.u32 64, %s19
      %v267 = vld [vmem:[%s245] sm:$0xf]
      %v268 = vld [vmem:[%s245 + $0x4] sm:$0xf]
      %v269 = vld [vmem:[%s245 + $0x8] sm:$0xf]
      %v270 = vld [vmem:[%s245 + $0xc] sm:$0xf]
      %v271 = vld [vmem:[%s245 + $0x10] sm:$0xf]
      %v272 = vld [vmem:[%s245 + $0x14] sm:$0xf]
      %v273 = vld [vmem:[%s245 + $0x18] sm:$0xf]
      %v274 = vld [vmem:[%s245 + $0x1c] sm:$0xf]
      %v275 = vld [vmem:[%s245 + $0x20] sm:$0xf]
      %v276 = vld [vmem:[%s245 + $0x24] sm:$0xf]
      %v277 = vld [vmem:[%s245 + $0x28] sm:$0xf]
      %v278 = vld [vmem:[%s245 + $0x2c] sm:$0xf]
      %v279 = vld [vmem:[%s245 + $0x30] sm:$0xf]
      %v280 = vld [vmem:[%s245 + $0x34] sm:$0xf]
      %v281 = vld [vmem:[%s245 + $0x38] sm:$0xf]
      %v282 = vld [vmem:[%s245 + $0x3c] sm:$0xf]
      %v283 = vld [vmem:[%s245 + $0x40] sm:$0xf]
      %v284 = vld [vmem:[%s245 + $0x44] sm:$0xf]
      %v285 = vld [vmem:[%s245 + $0x48] sm:$0xf]
      %v286 = vld [vmem:[%s245 + $0x4c] sm:$0xf]
      %v287 = vld [vmem:[%s245 + $0x50] sm:$0xf]
      %v288 = vld [vmem:[%s245 + $0x54] sm:$0xf]
      %v289 = vld [vmem:[%s245 + $0x58] sm:$0xf]
      %v290 = vld [vmem:[%s245 + $0x5c] sm:$0xf]
      %v291 = vld [vmem:[%s245 + $0x60] sm:$0xf]
      %v292 = vld [vmem:[%s245 + $0x64] sm:$0xf]
      %v293 = vld [vmem:[%s245 + $0x68] sm:$0xf]
      %v294 = vld [vmem:[%s245 + $0x6c] sm:$0xf]
      %v295 = vld [vmem:[%s245 + $0x70] sm:$0xf]
      %v296 = vld [vmem:[%s245 + $0x74] sm:$0xf]
      %v297 = vld [vmem:[%s245 + $0x78] sm:$0xf]
      %v298 = vld [vmem:[%s245 + $0x7c] sm:$0xf]
      %v299 = vld [vmem:[%s245 + $0x80] sm:$0xf]
      %v300 = vld [vmem:[%s245 + $0x84] sm:$0xf]
      %v301 = vld [vmem:[%s245 + $0x88] sm:$0xf]
      %v302 = vld [vmem:[%s245 + $0x8c] sm:$0xf]
      %v303 = vld [vmem:[%s245 + $0x90] sm:$0xf]
      %v304 = vld [vmem:[%s245 + $0x94] sm:$0xf]
      %v305 = vld [vmem:[%s245 + $0x98] sm:$0xf]
      %v306 = vld [vmem:[%s245 + $0x9c] sm:$0xf]
      %v307 = vld [vmem:[%s245 + $0xa0] sm:$0xf]
      %v308 = vld [vmem:[%s245 + $0xa4] sm:$0xf]
      %v309 = vld [vmem:[%s245 + $0xa8] sm:$0xf]
      %v310 = vld [vmem:[%s245 + $0xac] sm:$0xf]
      %v311 = vld [vmem:[%s245 + $0xb0] sm:$0xf]
      %v312 = vld [vmem:[%s245 + $0xb4] sm:$0xf]
      %v313 = vld [vmem:[%s245 + $0xb8] sm:$0xf]
      %v314 = vld [vmem:[%s245 + $0xbc] sm:$0xf]
      %v315 = vld [vmem:[%s245 + $0xc0] sm:$0xf]
      %v316 = vld [vmem:[%s245 + $0xc4] sm:$0xf]
      %v317 = vld [vmem:[%s245 + $0xc8] sm:$0xf]
      %v318 = vld [vmem:[%s245 + $0xcc] sm:$0xf]
      %v319 = vld [vmem:[%s245 + $0xd0] sm:$0xf]
      %v320 = vld [vmem:[%s245 + $0xd4] sm:$0xf]
      %v321 = vld [vmem:[%s245 + $0xd8] sm:$0xf]
      %v322 = vld [vmem:[%s245 + $0xdc] sm:$0xf]
      %v323 = vld [vmem:[%s245 + $0xe0] sm:$0xf]
      %v324 = vld [vmem:[%s245 + $0xe4] sm:$0xf]
      %v325 = vld [vmem:[%s245 + $0xe8] sm:$0xf]
      %v326 = vld [vmem:[%s245 + $0xec] sm:$0xf]
      %v327 = vld [vmem:[%s245 + $0xf0] sm:$0xf]
      %v328 = vld [vmem:[%s245 + $0xf4] sm:$0xf]
      %v329 = vld [vmem:[%s245 + $0xf8] sm:$0xf]
      %v330 = vld [vmem:[%s245 + $0xfc] sm:$0xf]
      %v331 = vld [vmem:[%s250] sm:$0xf]
      %v332 = vld [vmem:[%s250 + $0x4] sm:$0xf]
      %v333 = vld [vmem:[%s250 + $0x8] sm:$0xf]
      %v334 = vld [vmem:[%s250 + $0xc] sm:$0xf]
      %v399 = vunpack.c.l.b16 %v267
      %v400 = vunpack.c.l.b16 %v268
      %v401 = vunpack.c.l.b16 %v269
      %v402 = vunpack.c.l.b16 %v270
      %v403 = vunpack.c.l.b16 %v271
      %v404 = vunpack.c.l.b16 %v272
      %v405 = vunpack.c.l.b16 %v273
      %v406 = vunpack.c.l.b16 %v274
      %v407 = vunpack.c.l.b16 %v275
      %v408 = vunpack.c.l.b16 %v276
      %v409 = vunpack.c.l.b16 %v277
      %v410 = vunpack.c.l.b16 %v278
      %v411 = vunpack.c.l.b16 %v279
      %v412 = vunpack.c.l.b16 %v280
      %v413 = vunpack.c.l.b16 %v281
      %v414 = vunpack.c.l.b16 %v282
      %v415 = vunpack.c.l.b16 %v283
      %v416 = vunpack.c.l.b16 %v284
      %v417 = vunpack.c.l.b16 %v285
      %v418 = vunpack.c.l.b16 %v286
      %v419 = vunpack.c.l.b16 %v287
      %v420 = vunpack.c.l.b16 %v288
      %v421 = vunpack.c.l.b16 %v289
      %v422 = vunpack.c.l.b16 %v290
      %v423 = vunpack.c.l.b16 %v291
      %v424 = vunpack.c.l.b16 %v292
      %v425 = vunpack.c.l.b16 %v293
      %v426 = vunpack.c.l.b16 %v294
      %v427 = vunpack.c.l.b16 %v295
      %v428 = vunpack.c.l.b16 %v296
      %v429 = vunpack.c.l.b16 %v297
      %v430 = vunpack.c.l.b16 %v298
      %v431 = vunpack.c.l.b16 %v299
      %v432 = vunpack.c.l.b16 %v300
      %v433 = vunpack.c.l.b16 %v301
      %v434 = vunpack.c.l.b16 %v302
      %v435 = vunpack.c.l.b16 %v303
      %v436 = vunpack.c.l.b16 %v304
      %v437 = vunpack.c.l.b16 %v305
      %v438 = vunpack.c.l.b16 %v306
      %v439 = vunpack.c.l.b16 %v307
      %v440 = vunpack.c.l.b16 %v308
      %v441 = vunpack.c.l.b16 %v309
      %v442 = vunpack.c.l.b16 %v310
      %v443 = vunpack.c.l.b16 %v311
      %v444 = vunpack.c.l.b16 %v312
      %v445 = vunpack.c.l.b16 %v313
      %v446 = vunpack.c.l.b16 %v314
      %v447 = vunpack.c.l.b16 %v315
      %v448 = vunpack.c.l.b16 %v316
      %v449 = vunpack.c.l.b16 %v317
      %v450 = vunpack.c.l.b16 %v318
      %v451 = vunpack.c.l.b16 %v319
      %v452 = vunpack.c.l.b16 %v320
      %v453 = vunpack.c.l.b16 %v321
      %v454 = vunpack.c.l.b16 %v322
      %v455 = vunpack.c.l.b16 %v323
      %v456 = vunpack.c.l.b16 %v324
      %v457 = vunpack.c.l.b16 %v325
      %v458 = vunpack.c.l.b16 %v326
      %v459 = vunpack.c.l.b16 %v327
      %v460 = vunpack.c.l.b16 %v328
      %v461 = vunpack.c.l.b16 %v329
      %v462 = vunpack.c.l.b16 %v330
      %v463 = vpack.c.b16 %v400, %v399
      %v464 = vpack.c.b16 %v402, %v401
      %v465 = vpack.c.b16 %v404, %v403
      %v466 = vpack.c.b16 %v406, %v405
      %v467 = vpack.c.b16 %v408, %v407
      %v468 = vpack.c.b16 %v410, %v409
      %v469 = vpack.c.b16 %v412, %v411
      %v470 = vpack.c.b16 %v414, %v413
      %v471 = vpack.c.b16 %v416, %v415
      %v472 = vpack.c.b16 %v418, %v417
      %v473 = vpack.c.b16 %v420, %v419
      %v474 = vpack.c.b16 %v422, %v421
      %v475 = vpack.c.b16 %v424, %v423
      %v476 = vpack.c.b16 %v426, %v425
      %v477 = vpack.c.b16 %v428, %v427
      %v478 = vpack.c.b16 %v430, %v429
      %v479 = vpack.c.b16 %v432, %v431
      %v480 = vpack.c.b16 %v434, %v433
      %v481 = vpack.c.b16 %v436, %v435
      %v482 = vpack.c.b16 %v438, %v437
      %v483 = vpack.c.b16 %v440, %v439
      %v484 = vpack.c.b16 %v442, %v441
      %v485 = vpack.c.b16 %v444, %v443
      %v486 = vpack.c.b16 %v446, %v445
      %v487 = vpack.c.b16 %v448, %v447
      %v488 = vpack.c.b16 %v450, %v449
      %v489 = vpack.c.b16 %v452, %v451
      %v490 = vpack.c.b16 %v454, %v453
      %v491 = vpack.c.b16 %v456, %v455
      %v492 = vpack.c.b16 %v458, %v457
      %v493 = vpack.c.b16 %v460, %v459
      %v494 = vpack.c.b16 %v462, %v461
      %v499 = vunpack.c.l.b16 %v331
      %v500 = vunpack.c.l.b16 %v332
      %v501 = vunpack.c.l.b16 %v333
      %v502 = vunpack.c.l.b16 %v334
      %v503 = vpack.c.b16 %v500, %v499
      %v504 = vpack.c.b16 %v502, %v501
      %vm507 = vcmask 261120
      %v509 = vsel %vm507, %v463, 0
      %v512 = vsel %vm507, %v464, 0
      %v515 = vsel %vm507, %v465, 0
      %v518 = vsel %vm507, %v466, 0
      %v521 = vsel %vm507, %v467, 0
      %v524 = vsel %vm507, %v468, 0
      %v527 = vsel %vm507, %v469, 0
      %v530 = vsel %vm507, %v470, 0
      %v533 = vsel %vm507, %v471, 0
      %v536 = vsel %vm507, %v472, 0
      %v539 = vsel %vm507, %v473, 0
      %v542 = vsel %vm507, %v474, 0
      %v545 = vsel %vm507, %v475, 0
      %v548 = vsel %vm507, %v476, 0
      %v551 = vsel %vm507, %v477, 0
      %v554 = vsel %vm507, %v478, 0
      %v557 = vsel %vm507, %v479, 0
      %v560 = vsel %vm507, %v480, 0
      %v563 = vsel %vm507, %v481, 0
      %v566 = vsel %vm507, %v482, 0
      %v569 = vsel %vm507, %v483, 0
      %v572 = vsel %vm507, %v484, 0
      %v575 = vsel %vm507, %v485, 0
      %v578 = vsel %vm507, %v486, 0
      %v581 = vsel %vm507, %v487, 0
      %v584 = vsel %vm507, %v488, 0
      %v587 = vsel %vm507, %v489, 0
      %v590 = vsel %vm507, %v490, 0
      %v593 = vsel %vm507, %v491, 0
      %v596 = vsel %vm507, %v492, 0
      %v599 = vsel %vm507, %v493, 0
      %v602 = vsel %vm507, %v494, 0
      %604 = vmatprep.subr.bf16.mxu0 0
      %605 = vmatpush1.bf16.msra.mxu0 %v503
      %606 = vmatprep.subr.bf16.mxu0 0
      %607 = vmatpush1.bf16.msra.mxu0 %v504
      %608 = vmatprep.subr.bf16.mxu0 0
      %609 = vmatpush1.bf16.msra.mxu0 0
      %610 = vmatprep.subr.bf16.mxu0 0
      %611 = vmatpush1.bf16.msra.mxu0 0
      %612 = vmatprep.subr.bf16.mxu0 0
      %613 = vmatpush1.bf16.msra.mxu0 0
      %614 = vmatprep.subr.bf16.mxu0 0
      %615 = vmatpush1.bf16.msra.mxu0 0
      %616 = vmatprep.subr.bf16.mxu0 0
      %617 = vmatpush1.bf16.msra.mxu0 0
      %618 = vmatprep.subr.bf16.mxu0 0
      %619 = vmatpush1.bf16.msra.mxu0 0
      %620 = vmatprep.subr.bf16.mxu0 0
      %621 = vmatpush1.bf16.msra.mxu0 0
      %622 = vmatprep.subr.bf16.mxu0 0
      %623 = vmatpush1.bf16.msra.mxu0 0
      %624 = vmatprep.subr.bf16.mxu0 0
      %625 = vmatpush1.bf16.msra.mxu0 0
      %626 = vmatprep.subr.bf16.mxu0 0
      %627 = vmatpush1.bf16.msra.mxu0 0
      %628 = vmatprep.subr.bf16.mxu0 0
      %629 = vmatpush1.bf16.msra.mxu0 0
      %630 = vmatprep.subr.bf16.mxu0 0
      %631 = vmatpush1.bf16.msra.mxu0 0
      %632 = vmatprep.subr.bf16.mxu0 0
      %633 = vmatpush1.bf16.msra.mxu0 0
      %634 = vmatprep.subr.bf16.mxu0 0
      %635 = vmatpush1.bf16.msra.mxu0 0
      %636 = vmatprep.mubr.bf16.mxu0 0
      %637 = vmatmul.mubr.bf16.gmra.mrb[0].mxu0 %v509
      %v638 = vpop.f32.mrb[0].mxu0
      %v639 = vadd.f32 0.0, %v638
      %v640 = vpop.f32.mrb[0].mxu0
      %v641 = vpop.f32.mrb[0].mxu0
      %v642 = vadd.f32 0.0, %v641
      %v643 = vpop.f32.mrb[0].mxu0
      %644 = vmatprep.mubr.bf16.mxu0 0
      %645 = vmatmul.mubr.bf16.gmra.mrb[0].mxu0 %v512
      %v646 = vpop.f32.mrb[0].mxu0
      %v647 = vadd.f32 0.0, %v646
      %v648 = vpop.f32.mrb[0].mxu0
      %v649 = vpop.f32.mrb[0].mxu0
      %v650 = vadd.f32 0.0, %v649
      %v651 = vpop.f32.mrb[0].mxu0
      %652 = vmatprep.mubr.bf16.mxu0 0
      %653 = vmatmul.mubr.bf16.gmra.mrb[0].mxu0 %v515
      %v654 = vpop.f32.mrb[0].mxu0
      %v655 = vadd.f32 0.0, %v654
      %v656 = vpop.f32.mrb[0].mxu0
      %v657 = vpop.f32.mrb[0].mxu0
      %v658 = vadd.f32 0.0, %v657
      %v659 = vpop.f32.mrb[0].mxu0
      %660 = vmatprep.mubr.bf16.mxu0 0
      %661 = vmatmul.mubr.bf16.gmra.mrb[0].mxu0 %v518
      %v662 = vpop.f32.mrb[0].mxu0
      %v663 = vadd.f32 0.0, %v662
      %v664 = vpop.f32.mrb[0].mxu0
      %v665 = vpop.f32.mrb[0].mxu0
      %v666 = vadd.f32 0.0, %v665
      %v667 = vpop.f32.mrb[0].mxu0
      %668 = vmatprep.mubr.bf16.mxu0 0
      %669 = vmatmul.mubr.bf16.gmra.mrb[0].mxu0 %v521
      %v670 = vpop.f32.mrb[0].mxu0
      %v671 = vadd.f32 0.0, %v670
      %v672 = vpop.f32.mrb[0].mxu0
      %v673 = vpop.f32.mrb[0].mxu0
      %v674 = vadd.f32 0.0, %v673
      %v675 = vpop.f32.mrb[0].mxu0
      %676 = vmatprep.mubr.bf16.mxu0 0
      %677 = vmatmul.mubr.bf16.gmra.mrb[0].mxu0 %v524
      %v678 = vpop.f32.mrb[0].mxu0
      %v679 = vadd.f32 0.0, %v678
      %v680 = vpop.f32.mrb[0].mxu0
      %v681 = vpop.f32.mrb[0].mxu0
      %v682 = vadd.f32 0.0, %v681
      %v683 = vpop.f32.mrb[0].mxu0
      %684 = vmatprep.mubr.bf16.mxu0 0
      %685 = vmatmul.mubr.bf16.gmra.mrb[0].mxu0 %v527
      %v686 = vpop.f32.mrb[0].mxu0
      %v687 = vadd.f32 0.0, %v686
      %v688 = vpop.f32.mrb[0].mxu0
      %v689 = vpop.f32.mrb[0].mxu0
      %v690 = vadd.f32 0.0, %v689
      %v691 = vpop.f32.mrb[0].mxu0
      %692 = vmatprep.mubr.bf16.mxu0 0
      %693 = vmatmul.mubr.bf16.gmra.mrb[0].mxu0 %v530
      %v694 = vpop.f32.mrb[0].mxu0
      %v695 = vadd.f32 0.0, %v694
      %v696 = vpop.f32.mrb[0].mxu0
      %v697 = vpop.f32.mrb[0].mxu0
      %v698 = vadd.f32 0.0, %v697
      %v699 = vpop.f32.mrb[0].mxu0
      %700 = vmatprep.mubr.bf16.mxu0 0
      %701 = vmatmul.mubr.bf16.gmra.mrb[0].mxu0 %v533
      %v702 = vpop.f32.mrb[0].mxu0
      %v703 = vadd.f32 0.0, %v702
      %v704 = vpop.f32.mrb[0].mxu0
      %v705 = vpop.f32.mrb[0].mxu0
      %v706 = vadd.f32 0.0, %v705
      %v707 = vpop.f32.mrb[0].mxu0
      %708 = vmatprep.mubr.bf16.mxu0 0
      %709 = vmatmul.mubr.bf16.gmra.mrb[0].mxu0 %v536
      %v710 = vpop.f32.mrb[0].mxu0
      %v711 = vadd.f32 0.0, %v710
      %v712 = vpop.f32.mrb[0].mxu0
      %v713 = vpop.f32.mrb[0].mxu0
      %v714 = vadd.f32 0.0, %v713
      %v715 = vpop.f32.mrb[0].mxu0
      %716 = vmatprep.mubr.bf16.mxu0 0
      %717 = vmatmul.mubr.bf16.gmra.mrb[0].mxu0 %v539
      %v718 = vpop.f32.mrb[0].mxu0
      %v719 = vadd.f32 0.0, %v718
      %v720 = vpop.f32.mrb[0].mxu0
      %v721 = vpop.f32.mrb[0].mxu0
      %v722 = vadd.f32 0.0, %v721
      %v723 = vpop.f32.mrb[0].mxu0
      %724 = vmatprep.mubr.bf16.mxu0 0
      %725 = vmatmul.mubr.bf16.gmra.mrb[0].mxu0 %v542
      %v726 = vpop.f32.mrb[0].mxu0
      %v727 = vadd.f32 0.0, %v726
      %v728 = vpop.f32.mrb[0].mxu0
      %v729 = vpop.f32.mrb[0].mxu0
      %v730 = vadd.f32 0.0, %v729
      %v731 = vpop.f32.mrb[0].mxu0
      %732 = vmatprep.mubr.bf16.mxu0 0
      %733 = vmatmul.mubr.bf16.gmra.mrb[0].mxu0 %v545
      %v734 = vpop.f32.mrb[0].mxu0
      %v735 = vadd.f32 0.0, %v734
      %v736 = vpop.f32.mrb[0].mxu0
      %v737 = vpop.f32.mrb[0].mxu0
      %v738 = vadd.f32 0.0, %v737
      %v739 = vpop.f32.mrb[0].mxu0
      %740 = vmatprep.mubr.bf16.mxu0 0
      %741 = vmatmul.mubr.bf16.gmra.mrb[0].mxu0 %v548
      %v742 = vpop.f32.mrb[0].mxu0
      %v743 = vadd.f32 0.0, %v742
      %v744 = vpop.f32.mrb[0].mxu0
      %v745 = vpop.f32.mrb[0].mxu0
      %v746 = vadd.f32 0.0, %v745
      %v747 = vpop.f32.mrb[0].mxu0
      %748 = vmatprep.mubr.bf16.mxu0 0
      %749 = vmatmul.mubr.bf16.gmra.mrb[0].mxu0 %v551
      %v750 = vpop.f32.mrb[0].mxu0
      %v751 = vadd.f32 0.0, %v750
      %v752 = vpop.f32.mrb[0].mxu0
      %v753 = vpop.f32.mrb[0].mxu0
      %v754 = vadd.f32 0.0, %v753
      %v755 = vpop.f32.mrb[0].mxu0
      %756 = vmatprep.mubr.bf16.mxu0 0
      %757 = vmatmul.mubr.bf16.gmra.mrb[0].mxu0 %v554
      %v758 = vpop.f32.mrb[0].mxu0
      %v759 = vadd.f32 0.0, %v758
      %v760 = vpop.f32.mrb[0].mxu0
      %v761 = vpop.f32.mrb[0].mxu0
      %v762 = vadd.f32 0.0, %v761
      %v763 = vpop.f32.mrb[0].mxu0
      %764 = vmatprep.mubr.bf16.mxu0 0
      %765 = vmatmul.mubr.bf16.gmra.mrb[0].mxu0 %v557
      %v766 = vpop.f32.mrb[0].mxu0
      %v767 = vadd.f32 0.0, %v766
      %v768 = vpop.f32.mrb[0].mxu0
      %v769 = vpop.f32.mrb[0].mxu0
      %v770 = vadd.f32 0.0, %v769
      %v771 = vpop.f32.mrb[0].mxu0
      %772 = vmatprep.mubr.bf16.mxu0 0
      %773 = vmatmul.mubr.bf16.gmra.mrb[0].mxu0 %v560
      %v774 = vpop.f32.mrb[0].mxu0
      %v775 = vadd.f32 0.0, %v774
      %v776 = vpop.f32.mrb[0].mxu0
      %v777 = vpop.f32.mrb[0].mxu0
      %v778 = vadd.f32 0.0, %v777
      %v779 = vpop.f32.mrb[0].mxu0
      %780 = vmatprep.mubr.bf16.mxu0 0
      %781 = vmatmul.mubr.bf16.gmra.mrb[0].mxu0 %v563
      %v782 = vpop.f32.mrb[0].mxu0
      %v783 = vadd.f32 0.0, %v782
      %v784 = vpop.f32.mrb[0].mxu0
      %v785 = vpop.f32.mrb[0].mxu0
      %v786 = vadd.f32 0.0, %v785
      %v787 = vpop.f32.mrb[0].mxu0
      %788 = vmatprep.mubr.bf16.mxu0 0
      %789 = vmatmul.mubr.bf16.gmra.mrb[0].mxu0 %v566
      %v790 = vpop.f32.mrb[0].mxu0
      %v791 = vadd.f32 0.0, %v790
      %v792 = vpop.f32.mrb[0].mxu0
      %v793 = vpop.f32.mrb[0].mxu0
      %v794 = vadd.f32 0.0, %v793
      %v795 = vpop.f32.mrb[0].mxu0
      %796 = vmatprep.mubr.bf16.mxu0 0
      %797 = vmatmul.mubr.bf16.gmra.mrb[0].mxu0 %v569
      %v798 = vpop.f32.mrb[0].mxu0
      %v799 = vadd.f32 0.0, %v798
      %v800 = vpop.f32.mrb[0].mxu0
      %v801 = vpop.f32.mrb[0].mxu0
      %v802 = vadd.f32 0.0, %v801
      %v803 = vpop.f32.mrb[0].mxu0
      %804 = vmatprep.mubr.bf16.mxu0 0
      %805 = vmatmul.mubr.bf16.gmra.mrb[0].mxu0 %v572
      %v806 = vpop.f32.mrb[0].mxu0
      %v807 = vadd.f32 0.0, %v806
      %v808 = vpop.f32.mrb[0].mxu0
      %v809 = vpop.f32.mrb[0].mxu0
      %v810 = vadd.f32 0.0, %v809
      %v811 = vpop.f32.mrb[0].mxu0
      %812 = vmatprep.mubr.bf16.mxu0 0
      %813 = vmatmul.mubr.bf16.gmra.mrb[0].mxu0 %v575
      %v814 = vpop.f32.mrb[0].mxu0
      %v815 = vadd.f32 0.0, %v814
      %v816 = vpop.f32.mrb[0].mxu0
      %v817 = vpop.f32.mrb[0].mxu0
      %v818 = vadd.f32 0.0, %v817
      %v819 = vpop.f32.mrb[0].mxu0
      %820 = vmatprep.mubr.bf16.mxu0 0
      %821 = vmatmul.mubr.bf16.gmra.mrb[0].mxu0 %v578
      %v822 = vpop.f32.mrb[0].mxu0
      %v823 = vadd.f32 0.0, %v822
      %v824 = vpop.f32.mrb[0].mxu0
      %v825 = vpop.f32.mrb[0].mxu0
      %v826 = vadd.f32 0.0, %v825
      %v827 = vpop.f32.mrb[0].mxu0
      %828 = vmatprep.mubr.bf16.mxu0 0
      %829 = vmatmul.mubr.bf16.gmra.mrb[0].mxu0 %v581
      %v830 = vpop.f32.mrb[0].mxu0
      %v831 = vadd.f32 0.0, %v830
      %v832 = vpop.f32.mrb[0].mxu0
      %v833 = vpop.f32.mrb[0].mxu0
      %v834 = vadd.f32 0.0, %v833
      %v835 = vpop.f32.mrb[0].mxu0
      %836 = vmatprep.mubr.bf16.mxu0 0
      %837 = vmatmul.mubr.bf16.gmra.mrb[0].mxu0 %v584
      %v838 = vpop.f32.mrb[0].mxu0
      %v839 = vadd.f32 0.0, %v838
      %v840 = vpop.f32.mrb[0].mxu0
      %v841 = vpop.f32.mrb[0].mxu0
      %v842 = vadd.f32 0.0, %v841
      %v843 = vpop.f32.mrb[0].mxu0
      %844 = vmatprep.mubr.bf16.mxu0 0
      %845 = vmatmul.mubr.bf16.gmra.mrb[0].mxu0 %v587
      %v846 = vpop.f32.mrb[0].mxu0
      %v847 = vadd.f32 0.0, %v846
      %v848 = vpop.f32.mrb[0].mxu0
      %v849 = vpop.f32.mrb[0].mxu0
      %v850 = vadd.f32 0.0, %v849
      %v851 = vpop.f32.mrb[0].mxu0
      %852 = vmatprep.mubr.bf16.mxu0 0
      %853 = vmatmul.mubr.bf16.gmra.mrb[0].mxu0 %v590
      %v854 = vpop.f32.mrb[0].mxu0
      %v855 = vadd.f32 0.0, %v854
      %v856 = vpop.f32.mrb[0].mxu0
      %v857 = vpop.f32.mrb[0].mxu0
      %v858 = vadd.f32 0.0, %v857
      %v859 = vpop.f32.mrb[0].mxu0
      %860 = vmatprep.mubr.bf16.mxu0 0
      %861 = vmatmul.mubr.bf16.gmra.mrb[0].mxu0 %v593
      %v862 = vpop.f32.mrb[0].mxu0
      %v863 = vadd.f32 0.0, %v862
      %v864 = vpop.f32.mrb[0].mxu0
      %v865 = vpop.f32.mrb[0].mxu0
      %v866 = vadd.f32 0.0, %v865
      %v867 = vpop.f32.mrb[0].mxu0
      %868 = vmatprep.mubr.bf16.mxu0 0
      %869 = vmatmul.mubr.bf16.gmra.mrb[0].mxu0 %v596
      %v870 = vpop.f32.mrb[0].mxu0
      %v871 = vadd.f32 0.0, %v870
      %v872 = vpop.f32.mrb[0].mxu0
      %v873 = vpop.f32.mrb[0].mxu0
      %v874 = vadd.f32 0.0, %v873
      %v875 = vpop.f32.mrb[0].mxu0
      %876 = vmatprep.mubr.bf16.mxu0 0
      %877 = vmatmul.mubr.bf16.gmra.mrb[0].mxu0 %v599
      %v878 = vpop.f32.mrb[0].mxu0
      %v879 = vadd.f32 0.0, %v878
      %v880 = vpop.f32.mrb[0].mxu0
      %v881 = vpop.f32.mrb[0].mxu0
      %v882 = vadd.f32 0.0, %v881
      %v883 = vpop.f32.mrb[0].mxu0
      %884 = vmatprep.mubr.bf16.mxu0 0
      %885 = vmatmul.mubr.bf16.gmra.mrb[0].mxu0 %v602
      %v886 = vpop.f32.mrb[0].mxu0
      %v887 = vadd.f32 0.0, %v886
      %v888 = vpop.f32.mrb[0].mxu0
      %v889 = vpop.f32.mrb[0].mxu0
      %v890 = vadd.f32 0.0, %v889
      %v891 = vpop.f32.mrb[0].mxu0
      %892 = vdwg.mxu0
      %v893 = vld [vmem:[%s253] sm:$0x1]
      %v895 = vlaneseq
      %v896 = vshrl.u32 %v895, 7
      %v897 = vsub.s32 0, %v896
      %v898 = vrot.slane %v893, %v897
      %v900 = vmul.f32 %v639, %v898
      %v901 = vmul.f32 %v642, %v898
      %v902 = vmul.f32 %v647, %v898
      %v903 = vmul.f32 %v650, %v898
      %v904 = vmul.f32 %v655, %v898
      %v905 = vmul.f32 %v658, %v898
      %v906 = vmul.f32 %v663, %v898
      %v907 = vmul.f32 %v666, %v898
      %v908 = vmul.f32 %v671, %v898
      %v909 = vmul.f32 %v674, %v898
      %v910 = vmul.f32 %v679, %v898
      %v911 = vmul.f32 %v682, %v898
      %v912 = vmul.f32 %v687, %v898
      %v913 = vmul.f32 %v690, %v898
      %v914 = vmul.f32 %v695, %v898
      %v915 = vmul.f32 %v698, %v898
      %v916 = vmul.f32 %v703, %v898
      %v917 = vmul.f32 %v706, %v898
      %v918 = vmul.f32 %v711, %v898
      %v919 = vmul.f32 %v714, %v898
      %v920 = vmul.f32 %v719, %v898
      %v921 = vmul.f32 %v722, %v898
      %v922 = vmul.f32 %v727, %v898
      %v923 = vmul.f32 %v730, %v898
      %v924 = vmul.f32 %v735, %v898
      %v925 = vmul.f32 %v738, %v898
      %v926 = vmul.f32 %v743, %v898
      %v927 = vmul.f32 %v746, %v898
      %v928 = vmul.f32 %v751, %v898
      %v929 = vmul.f32 %v754, %v898
      %v930 = vmul.f32 %v759, %v898
      %v931 = vmul.f32 %v762, %v898
      %v932 = vmul.f32 %v767, %v898
      %v933 = vmul.f32 %v770, %v898
      %v934 = vmul.f32 %v775, %v898
      %v935 = vmul.f32 %v778, %v898
      %v936 = vmul.f32 %v783, %v898
      %v937 = vmul.f32 %v786, %v898
      %v938 = vmul.f32 %v791, %v898
      %v939 = vmul.f32 %v794, %v898
      %v940 = vmul.f32 %v799, %v898
      %v941 = vmul.f32 %v802, %v898
      %v942 = vmul.f32 %v807, %v898
      %v943 = vmul.f32 %v810, %v898
      %v944 = vmul.f32 %v815, %v898
      %v945 = vmul.f32 %v818, %v898
      %v946 = vmul.f32 %v823, %v898
      %v947 = vmul.f32 %v826, %v898
      %v948 = vmul.f32 %v831, %v898
      %v949 = vmul.f32 %v834, %v898
      %v950 = vmul.f32 %v839, %v898
      %v951 = vmul.f32 %v842, %v898
      %v952 = vmul.f32 %v847, %v898
      %v953 = vmul.f32 %v850, %v898
      %v954 = vmul.f32 %v855, %v898
      %v955 = vmul.f32 %v858, %v898
      %v956 = vmul.f32 %v863, %v898
      %v957 = vmul.f32 %v866, %v898
      %v958 = vmul.f32 %v871, %v898
      %v959 = vmul.f32 %v874, %v898
      %v960 = vmul.f32 %v879, %v898
      %v961 = vmul.f32 %v882, %v898
      %v962 = vmul.f32 %v887, %v898
      %v963 = vmul.f32 %v890, %v898
      %v964 = vld [vmem:[%s256] sm:$0x1]
      %v966 = vlaneseq
      %v967 = vshrl.u32 %v966, 7
      %v968 = vsub.s32 0, %v967
      %v969 = vrot.slane %v964, %v968
      %v971 = vadd.f32 %v900, %v969
      %v972 = vadd.f32 %v901, %v969
      %v973 = vadd.f32 %v902, %v969
      %v974 = vadd.f32 %v903, %v969
      %v975 = vadd.f32 %v904, %v969
      %v976 = vadd.f32 %v905, %v969
      %v977 = vadd.f32 %v906, %v969
      %v978 = vadd.f32 %v907, %v969
      %v979 = vadd.f32 %v908, %v969
      %v980 = vadd.f32 %v909, %v969
      %v981 = vadd.f32 %v910, %v969
      %v982 = vadd.f32 %v911, %v969
      %v983 = vadd.f32 %v912, %v969
      %v984 = vadd.f32 %v913, %v969
      %v985 = vadd.f32 %v914, %v969
      %v986 = vadd.f32 %v915, %v969
      %v987 = vadd.f32 %v916, %v969
      %v988 = vadd.f32 %v917, %v969
      %v989 = vadd.f32 %v918, %v969
      %v990 = vadd.f32 %v919, %v969
      %v991 = vadd.f32 %v920, %v969
      %v992 = vadd.f32 %v921, %v969
      %v993 = vadd.f32 %v922, %v969
      %v994 = vadd.f32 %v923, %v969
      %v995 = vadd.f32 %v924, %v969
      %v996 = vadd.f32 %v925, %v969
      %v997 = vadd.f32 %v926, %v969
      %v998 = vadd.f32 %v927, %v969
      %v999 = vadd.f32 %v928, %v969
      %v1000 = vadd.f32 %v929, %v969
      %v1001 = vadd.f32 %v930, %v969
      %v1002 = vadd.f32 %v931, %v969
      %v1003 = vadd.f32 %v932, %v969
      %v1004 = vadd.f32 %v933, %v969
      %v1005 = vadd.f32 %v934, %v969
      %v1006 = vadd.f32 %v935, %v969
      %v1007 = vadd.f32 %v936, %v969
      %v1008 = vadd.f32 %v937, %v969
      %v1009 = vadd.f32 %v938, %v969
      %v1010 = vadd.f32 %v939, %v969
      %v1011 = vadd.f32 %v940, %v969
      %v1012 = vadd.f32 %v941, %v969
      %v1013 = vadd.f32 %v942, %v969
      %v1014 = vadd.f32 %v943, %v969
      %v1015 = vadd.f32 %v944, %v969
      %v1016 = vadd.f32 %v945, %v969
      %v1017 = vadd.f32 %v946, %v969
      %v1018 = vadd.f32 %v947, %v969
      %v1019 = vadd.f32 %v948, %v969
      %v1020 = vadd.f32 %v949, %v969
      %v1021 = vadd.f32 %v950, %v969
      %v1022 = vadd.f32 %v951, %v969
      %v1023 = vadd.f32 %v952, %v969
      %v1024 = vadd.f32 %v953, %v969
      %v1025 = vadd.f32 %v954, %v969
      %v1026 = vadd.f32 %v955, %v969
      %v1027 = vadd.f32 %v956, %v969
      %v1028 = vadd.f32 %v957, %v969
      %v1029 = vadd.f32 %v958, %v969
      %v1030 = vadd.f32 %v959, %v969
      %v1031 = vadd.f32 %v960, %v969
      %v1032 = vadd.f32 %v961, %v969
      %v1033 = vadd.f32 %v962, %v969
      %v1034 = vadd.f32 %v963, %v969
      %v1035 = vmax.f32 %v971, 0.0
      %v1036 = vmax.f32 %v972, 0.0
      %v1037 = vmax.f32 %v973, 0.0
      %v1038 = vmax.f32 %v974, 0.0
      %v1039 = vmax.f32 %v975, 0.0
      %v1040 = vmax.f32 %v976, 0.0
      %v1041 = vmax.f32 %v977, 0.0
      %v1042 = vmax.f32 %v978, 0.0
      %v1043 = vmax.f32 %v979, 0.0
      %v1044 = vmax.f32 %v980, 0.0
      %v1045 = vmax.f32 %v981, 0.0
      %v1046 = vmax.f32 %v982, 0.0
      %v1047 = vmax.f32 %v983, 0.0
      %v1048 = vmax.f32 %v984, 0.0
      %v1049 = vmax.f32 %v985, 0.0
      %v1050 = vmax.f32 %v986, 0.0
      %v1051 = vmax.f32 %v987, 0.0
      %v1052 = vmax.f32 %v988, 0.0
      %v1053 = vmax.f32 %v989, 0.0
      %v1054 = vmax.f32 %v990, 0.0
      %v1055 = vmax.f32 %v991, 0.0
      %v1056 = vmax.f32 %v992, 0.0
      %v1057 = vmax.f32 %v993, 0.0
      %v1058 = vmax.f32 %v994, 0.0
      %v1059 = vmax.f32 %v995, 0.0
      %v1060 = vmax.f32 %v996, 0.0
      %v1061 = vmax.f32 %v997, 0.0
      %v1062 = vmax.f32 %v998, 0.0
      %v1063 = vmax.f32 %v999, 0.0
      %v1064 = vmax.f32 %v1000, 0.0
      %v1065 = vmax.f32 %v1001, 0.0
      %v1066 = vmax.f32 %v1002, 0.0
      %v1067 = vmax.f32 %v1003, 0.0
      %v1068 = vmax.f32 %v1004, 0.0
      %v1069 = vmax.f32 %v1005, 0.0
      %v1070 = vmax.f32 %v1006, 0.0
      %v1071 = vmax.f32 %v1007, 0.0
      %v1072 = vmax.f32 %v1008, 0.0
      %v1073 = vmax.f32 %v1009, 0.0
      %v1074 = vmax.f32 %v1010, 0.0
      %v1075 = vmax.f32 %v1011, 0.0
      %v1076 = vmax.f32 %v1012, 0.0
      %v1077 = vmax.f32 %v1013, 0.0
      %v1078 = vmax.f32 %v1014, 0.0
      %v1079 = vmax.f32 %v1015, 0.0
      %v1080 = vmax.f32 %v1016, 0.0
      %v1081 = vmax.f32 %v1017, 0.0
      %v1082 = vmax.f32 %v1018, 0.0
      %v1083 = vmax.f32 %v1019, 0.0
      %v1084 = vmax.f32 %v1020, 0.0
      %v1085 = vmax.f32 %v1021, 0.0
      %v1086 = vmax.f32 %v1022, 0.0
      %v1087 = vmax.f32 %v1023, 0.0
      %v1088 = vmax.f32 %v1024, 0.0
      %v1089 = vmax.f32 %v1025, 0.0
      %v1090 = vmax.f32 %v1026, 0.0
      %v1091 = vmax.f32 %v1027, 0.0
      %v1092 = vmax.f32 %v1028, 0.0
      %v1093 = vmax.f32 %v1029, 0.0
      %v1094 = vmax.f32 %v1030, 0.0
      %v1095 = vmax.f32 %v1031, 0.0
      %v1096 = vmax.f32 %v1032, 0.0
      %v1097 = vmax.f32 %v1033, 0.0
      %v1098 = vmax.f32 %v1034, 0.0
      %v1099 = vpack.c.bf16 %v1036, %v1035
      %v1100 = vpack.c.bf16 %v1038, %v1037
      %v1101 = vpack.c.bf16 %v1040, %v1039
      %v1102 = vpack.c.bf16 %v1042, %v1041
      %v1103 = vpack.c.bf16 %v1044, %v1043
      %v1104 = vpack.c.bf16 %v1046, %v1045
      %v1105 = vpack.c.bf16 %v1048, %v1047
      %v1106 = vpack.c.bf16 %v1050, %v1049
      %v1107 = vpack.c.bf16 %v1052, %v1051
      %v1108 = vpack.c.bf16 %v1054, %v1053
      %v1109 = vpack.c.bf16 %v1056, %v1055
      %v1110 = vpack.c.bf16 %v1058, %v1057
      %v1111 = vpack.c.bf16 %v1060, %v1059
      %v1112 = vpack.c.bf16 %v1062, %v1061
      %v1113 = vpack.c.bf16 %v1064, %v1063
      %v1114 = vpack.c.bf16 %v1066, %v1065
      %v1115 = vpack.c.bf16 %v1068, %v1067
      %v1116 = vpack.c.bf16 %v1070, %v1069
      %v1117 = vpack.c.bf16 %v1072, %v1071
      %v1118 = vpack.c.bf16 %v1074, %v1073
      %v1119 = vpack.c.bf16 %v1076, %v1075
      %v1120 = vpack.c.bf16 %v1078, %v1077
      %v1121 = vpack.c.bf16 %v1080, %v1079
      %v1122 = vpack.c.bf16 %v1082, %v1081
      %v1123 = vpack.c.bf16 %v1084, %v1083
      %v1124 = vpack.c.bf16 %v1086, %v1085
      %v1125 = vpack.c.bf16 %v1088, %v1087
      %v1126 = vpack.c.bf16 %v1090, %v1089
      %v1127 = vpack.c.bf16 %v1092, %v1091
      %v1128 = vpack.c.bf16 %v1094, %v1093
      %v1129 = vpack.c.bf16 %v1096, %v1095
      %v1130 = vpack.c.bf16 %v1098, %v1097
      %v1163 = vunpack.c.l.b16 %v1099
      %v1164 = vunpack.c.h.b16 %v1099
      %v1165 = vunpack.c.l.b16 %v1100
      %v1166 = vunpack.c.h.b16 %v1100
      %v1167 = vunpack.c.l.b16 %v1101
      %v1168 = vunpack.c.h.b16 %v1101
      %v1169 = vunpack.c.l.b16 %v1102
      %v1170 = vunpack.c.h.b16 %v1102
      %v1171 = vunpack.c.l.b16 %v1103
      %v1172 = vunpack.c.h.b16 %v1103
      %v1173 = vunpack.c.l.b16 %v1104
      %v1174 = vunpack.c.h.b16 %v1104
      %v1175 = vunpack.c.l.b16 %v1105
      %v1176 = vunpack.c.h.b16 %v1105
      %v1177 = vunpack.c.l.b16 %v1106
      %v1178 = vunpack.c.h.b16 %v1106
      %v1179 = vunpack.c.l.b16 %v1107
      %v1180 = vunpack.c.h.b16 %v1107
      %v1181 = vunpack.c.l.b16 %v1108
      %v1182 = vunpack.c.h.b16 %v1108
      %v1183 = vunpack.c.l.b16 %v1109
      %v1184 = vunpack.c.h.b16 %v1109
      %v1185 = vunpack.c.l.b16 %v1110
      %v1186 = vunpack.c.h.b16 %v1110
      %v1187 = vunpack.c.l.b16 %v1111
      %v1188 = vunpack.c.h.b16 %v1111
      %v1189 = vunpack.c.l.b16 %v1112
      %v1190 = vunpack.c.h.b16 %v1112
      %v1191 = vunpack.c.l.b16 %v1113
      %v1192 = vunpack.c.h.b16 %v1113
      %v1193 = vunpack.c.l.b16 %v1114
      %v1194 = vunpack.c.h.b16 %v1114
      %v1195 = vunpack.c.l.b16 %v1115
      %v1196 = vunpack.c.h.b16 %v1115
      %v1197 = vunpack.c.l.b16 %v1116
      %v1198 = vunpack.c.h.b16 %v1116
      %v1199 = vunpack.c.l.b16 %v1117
      %v1200 = vunpack.c.h.b16 %v1117
      %v1201 = vunpack.c.l.b16 %v1118
      %v1202 = vunpack.c.h.b16 %v1118
      %v1203 = vunpack.c.l.b16 %v1119
      %v1204 = vunpack.c.h.b16 %v1119
      %v1205 = vunpack.c.l.b16 %v1120
      %v1206 = vunpack.c.h.b16 %v1120
      %v1207 = vunpack.c.l.b16 %v1121
      %v1208 = vunpack.c.h.b16 %v1121
      %v1209 = vunpack.c.l.b16 %v1122
      %v1210 = vunpack.c.h.b16 %v1122
      %v1211 = vunpack.c.l.b16 %v1123
      %v1212 = vunpack.c.h.b16 %v1123
      %v1213 = vunpack.c.l.b16 %v1124
      %v1214 = vunpack.c.h.b16 %v1124
      %v1215 = vunpack.c.l.b16 %v1125
      %v1216 = vunpack.c.h.b16 %v1125
      %v1217 = vunpack.c.l.b16 %v1126
      %v1218 = vunpack.c.h.b16 %v1126
      %v1219 = vunpack.c.l.b16 %v1127
      %v1220 = vunpack.c.h.b16 %v1127
      %v1221 = vunpack.c.l.b16 %v1128
      %v1222 = vunpack.c.h.b16 %v1128
      %v1223 = vunpack.c.l.b16 %v1129
      %v1224 = vunpack.c.h.b16 %v1129
      %v1225 = vunpack.c.l.b16 %v1130
      %v1226 = vunpack.c.h.b16 %v1130
      %v1227 = vpack.c.b16 %v1163, %v1163
      %v1228 = vpack.c.b16 %v1164, %v1164
      %v1229 = vpack.c.b16 %v1165, %v1165
      %v1230 = vpack.c.b16 %v1166, %v1166
      %v1231 = vpack.c.b16 %v1167, %v1167
      %v1232 = vpack.c.b16 %v1168, %v1168
      %v1233 = vpack.c.b16 %v1169, %v1169
      %v1234 = vpack.c.b16 %v1170, %v1170
      %v1235 = vpack.c.b16 %v1171, %v1171
      %v1236 = vpack.c.b16 %v1172, %v1172
      %v1237 = vpack.c.b16 %v1173, %v1173
      %v1238 = vpack.c.b16 %v1174, %v1174
      %v1239 = vpack.c.b16 %v1175, %v1175
      %v1240 = vpack.c.b16 %v1176, %v1176
      %v1241 = vpack.c.b16 %v1177, %v1177
      %v1242 = vpack.c.b16 %v1178, %v1178
      %v1243 = vpack.c.b16 %v1179, %v1179
      %v1244 = vpack.c.b16 %v1180, %v1180
      %v1245 = vpack.c.b16 %v1181, %v1181
      %v1246 = vpack.c.b16 %v1182, %v1182
      %v1247 = vpack.c.b16 %v1183, %v1183
      %v1248 = vpack.c.b16 %v1184, %v1184
      %v1249 = vpack.c.b16 %v1185, %v1185
      %v1250 = vpack.c.b16 %v1186, %v1186
      %v1251 = vpack.c.b16 %v1187, %v1187
      %v1252 = vpack.c.b16 %v1188, %v1188
      %v1253 = vpack.c.b16 %v1189, %v1189
      %v1254 = vpack.c.b16 %v1190, %v1190
      %v1255 = vpack.c.b16 %v1191, %v1191
      %v1256 = vpack.c.b16 %v1192, %v1192
      %v1257 = vpack.c.b16 %v1193, %v1193
      %v1258 = vpack.c.b16 %v1194, %v1194
      %v1259 = vpack.c.b16 %v1195, %v1195
      %v1260 = vpack.c.b16 %v1196, %v1196
      %v1261 = vpack.c.b16 %v1197, %v1197
      %v1262 = vpack.c.b16 %v1198, %v1198
      %v1263 = vpack.c.b16 %v1199, %v1199
      %v1264 = vpack.c.b16 %v1200, %v1200
      %v1265 = vpack.c.b16 %v1201, %v1201
      %v1266 = vpack.c.b16 %v1202, %v1202
      %v1267 = vpack.c.b16 %v1203, %v1203
      %v1268 = vpack.c.b16 %v1204, %v1204
      %v1269 = vpack.c.b16 %v1205, %v1205
      %v1270 = vpack.c.b16 %v1206, %v1206
      %v1271 = vpack.c.b16 %v1207, %v1207
      %v1272 = vpack.c.b16 %v1208, %v1208
      %v1273 = vpack.c.b16 %v1209, %v1209
      %v1274 = vpack.c.b16 %v1210, %v1210
      %v1275 = vpack.c.b16 %v1211, %v1211
      %v1276 = vpack.c.b16 %v1212, %v1212
      %v1277 = vpack.c.b16 %v1213, %v1213
      %v1278 = vpack.c.b16 %v1214, %v1214
      %v1279 = vpack.c.b16 %v1215, %v1215
      %v1280 = vpack.c.b16 %v1216, %v1216
      %v1281 = vpack.c.b16 %v1217, %v1217
      %v1282 = vpack.c.b16 %v1218, %v1218
      %v1283 = vpack.c.b16 %v1219, %v1219
      %v1284 = vpack.c.b16 %v1220, %v1220
      %v1285 = vpack.c.b16 %v1221, %v1221
      %v1286 = vpack.c.b16 %v1222, %v1222
      %v1287 = vpack.c.b16 %v1223, %v1223
      %v1288 = vpack.c.b16 %v1224, %v1224
      %v1289 = vpack.c.b16 %v1225, %v1225
      %v1290 = vpack.c.b16 %v1226, %v1226
      %vm1355 = vcmask 519168
      %1356 = vst.msk [vmem:[%s264] sm:$0xf] %vm1355, %v1227
      %1357 = vst.msk [vmem:[%s264 + $0x4] sm:$0xf] %vm1355, %v1228
      %1358 = vst.msk [vmem:[%s264 + $0x8] sm:$0xf] %vm1355, %v1229
      %1359 = vst.msk [vmem:[%s264 + $0xc] sm:$0xf] %vm1355, %v1230
      %1360 = vst.msk [vmem:[%s264 + $0x10] sm:$0xf] %vm1355, %v1231
      %1361 = vst.msk [vmem:[%s264 + $0x14] sm:$0xf] %vm1355, %v1232
      %1362 = vst.msk [vmem:[%s264 + $0x18] sm:$0xf] %vm1355, %v1233
      %1363 = vst.msk [vmem:[%s264 + $0x1c] sm:$0xf] %vm1355, %v1234
      %1364 = vst.msk [vmem:[%s264 + $0x20] sm:$0xf] %vm1355, %v1235
      %1365 = vst.msk [vmem:[%s264 + $0x24] sm:$0xf] %vm1355, %v1236
      %1366 = vst.msk [vmem:[%s264 + $0x28] sm:$0xf] %vm1355, %v1237
      %1367 = vst.msk [vmem:[%s264 + $0x2c] sm:$0xf] %vm1355, %v1238
      %1368 = vst.msk [vmem:[%s264 + $0x30] sm:$0xf] %vm1355, %v1239
      %1369 = vst.msk [vmem:[%s264 + $0x34] sm:$0xf] %vm1355, %v1240
      %1370 = vst.msk [vmem:[%s264 + $0x38] sm:$0xf] %vm1355, %v1241
      %1371 = vst.msk [vmem:[%s264 + $0x3c] sm:$0xf] %vm1355, %v1242
      %1372 = vst.msk [vmem:[%s264 + $0x40] sm:$0xf] %vm1355, %v1243
      %1373 = vst.msk [vmem:[%s264 + $0x44] sm:$0xf] %vm1355, %v1244
      %1374 = vst.msk [vmem:[%s264 + $0x48] sm:$0xf] %vm1355, %v1245
      %1375 = vst.msk [vmem:[%s264 + $0x4c] sm:$0xf] %vm1355, %v1246
      %1376 = vst.msk [vmem:[%s264 + $0x50] sm:$0xf] %vm1355, %v1247
      %1377 = vst.msk [vmem:[%s264 + $0x54] sm:$0xf] %vm1355, %v1248
      %1378 = vst.msk [vmem:[%s264 + $0x58] sm:$0xf] %vm1355, %v1249
      %1379 = vst.msk [vmem:[%s264 + $0x5c] sm:$0xf] %vm1355, %v1250
      %1380 = vst.msk [vmem:[%s264 + $0x60] sm:$0xf] %vm1355, %v1251
      %1381 = vst.msk [vmem:[%s264 + $0x64] sm:$0xf] %vm1355, %v1252
      %1382 = vst.msk [vmem:[%s264 + $0x68] sm:$0xf] %vm1355, %v1253
      %1383 = vst.msk [vmem:[%s264 + $0x6c] sm:$0xf] %vm1355, %v1254
      %1384 = vst.msk [vmem:[%s264 + $0x70] sm:$0xf] %vm1355, %v1255
      %1385 = vst.msk [vmem:[%s264 + $0x74] sm:$0xf] %vm1355, %v1256
      %1386 = vst.msk [vmem:[%s264 + $0x78] sm:$0xf] %vm1355, %v1257
      %1387 = vst.msk [vmem:[%s264 + $0x7c] sm:$0xf] %vm1355, %v1258
      %1388 = vst.msk [vmem:[%s264 + $0x80] sm:$0xf] %vm1355, %v1259
      %1389 = vst.msk [vmem:[%s264 + $0x84] sm:$0xf] %vm1355, %v1260
      %1390 = vst.msk [vmem:[%s264 + $0x88] sm:$0xf] %vm1355, %v1261
      %1391 = vst.msk [vmem:[%s264 + $0x8c] sm:$0xf] %vm1355, %v1262
      %1392 = vst.msk [vmem:[%s264 + $0x90] sm:$0xf] %vm1355, %v1263
      %1393 = vst.msk [vmem:[%s264 + $0x94] sm:$0xf] %vm1355, %v1264
      %1394 = vst.msk [vmem:[%s264 + $0x98] sm:$0xf] %vm1355, %v1265
      %1395 = vst.msk [vmem:[%s264 + $0x9c] sm:$0xf] %vm1355, %v1266
      %1396 = vst.msk [vmem:[%s264 + $0xa0] sm:$0xf] %vm1355, %v1267
      %1397 = vst.msk [vmem:[%s264 + $0xa4] sm:$0xf] %vm1355, %v1268
      %1398 = vst.msk [vmem:[%s264 + $0xa8] sm:$0xf] %vm1355, %v1269
      %1399 = vst.msk [vmem:[%s264 + $0xac] sm:$0xf] %vm1355, %v1270
      %1400 = vst.msk [vmem:[%s264 + $0xb0] sm:$0xf] %vm1355, %v1271
      %1401 = vst.msk [vmem:[%s264 + $0xb4] sm:$0xf] %vm1355, %v1272
      %1402 = vst.msk [vmem:[%s264 + $0xb8] sm:$0xf] %vm1355, %v1273
      %1403 = vst.msk [vmem:[%s264 + $0xbc] sm:$0xf] %vm1355, %v1274
      %1404 = vst.msk [vmem:[%s264 + $0xc0] sm:$0xf] %vm1355, %v1275
      %1405 = vst.msk [vmem:[%s264 + $0xc4] sm:$0xf] %vm1355, %v1276
      %1406 = vst.msk [vmem:[%s264 + $0xc8] sm:$0xf] %vm1355, %v1277
      %1407 = vst.msk [vmem:[%s264 + $0xcc] sm:$0xf] %vm1355, %v1278
      %1408 = vst.msk [vmem:[%s264 + $0xd0] sm:$0xf] %vm1355, %v1279
      %1409 = vst.msk [vmem:[%s264 + $0xd4] sm:$0xf] %vm1355, %v1280
      %1410 = vst.msk [vmem:[%s264 + $0xd8] sm:$0xf] %vm1355, %v1281
      %1411 = vst.msk [vmem:[%s264 + $0xdc] sm:$0xf] %vm1355, %v1282
      %1412 = vst.msk [vmem:[%s264 + $0xe0] sm:$0xf] %vm1355, %v1283
      %1413 = vst.msk [vmem:[%s264 + $0xe4] sm:$0xf] %vm1355, %v1284
      %1414 = vst.msk [vmem:[%s264 + $0xe8] sm:$0xf] %vm1355, %v1285
      %1415 = vst.msk [vmem:[%s264 + $0xec] sm:$0xf] %vm1355, %v1286
      %1416 = vst.msk [vmem:[%s264 + $0xf0] sm:$0xf] %vm1355, %v1287
      %1417 = vst.msk [vmem:[%s264 + $0xf4] sm:$0xf] %vm1355, %v1288
      %1418 = vst.msk [vmem:[%s264 + $0xf8] sm:$0xf] %vm1355, %v1289
      %1419 = vst.msk [vmem:[%s264 + $0xfc] sm:$0xf] %vm1355, %v1290
      %s1420 = smul.u32 64, %s19
      %p1421 = scmp.lt.s32.totalorder %s1420, 255
      %s1422 = scalar_select %p1421, %s1420, 255
      %p1423 = scmp.lt.s32.totalorder %s20, 0
      %s1424 = scalar_select %p1423, %s20, 0
      %s1425 = sadd.s32 %s1424, %s1422
      %s1426 = smul.addr %s1425, 4
      %s1427 = scalar_lea.vmem %s4, %s1426
      // Predicated region
      $region37: #{tpu_custom_call.1} parent=35 // pred_check
        %p1428 = pneg %p151
      $region38: #{tpu_custom_call.1} parent=35 // pred_check_branch
        %1430 = sbr.rel (%p1428) target = $region40
      $region39: #{tpu_custom_call.1} parent=35 // pred_region
        %s1431 = smul.u32 64, %s19
      $region40: #{tpu_custom_call.1} parent=35 // pred_fallthru
        _
    $region36: #{tpu_custom_call.1} parent=5 // pred_fallthru
      _
    %p1432 = scmp.le.s32.totalorder 2, %s10
    // Predicated region
    $region41: #{tpu_custom_call.1} parent=5 // pred_check
      %p1433 = pneg %p1432
    $region42: #{tpu_custom_call.1} parent=5 // pred_check_branch
      %1435 = sbr.rel (%p1433) target = $region44
    $region43: #{tpu_custom_call.1} parent=5 // pred_region
      %s1436 = ssub.s32 %s10, 2
      // Predicated region
      $region45: #{tpu_custom_call.1} parent=43 // pred_check
        %p1437 = pneg %p157
      $region46: #{tpu_custom_call.1} parent=43 // pred_check_branch
        %1439 = sbr.rel (%p1437) target = $region48
      $region47: #{tpu_custom_call.1} parent=43 // pred_region
        %s1440 = smul.u32 64, %s21
        %p1441 = scmp.lt.s32.totalorder %s1440, 255
        %s1442 = scalar_select %p1441, %s1440, 255
        %p1443 = scmp.lt.s32.totalorder %s22, 0
        %s1444 = scalar_select %p1443, %s22, 0
        %s1445 = sadd.s32 %s1444, %s1442
        %s1446 = smul.addr %s1445, 4
        %s1447 = scalar_lea.vmem %s4, %s1446
      $region48: #{tpu_custom_call.1} parent=43 // pred_fallthru
        _
    $region44: #{tpu_custom_call.1} parent=5 // pred_fallthru
      _
  $region6: #{tpu_custom_call.1} parent=0 // loop_footer
    %s14 = sadd.s32 1, %s10
  $region7: #{tpu_custom_call.1} parent=0 // loop_footer_branch
    %9 = sbr.rel target = $region3
  $region8: #{tpu_custom_call.1} parent=0 // loop_exit
    _

</llo_original>
